<compile_context>
chip_gen: v7x
topology: tpu7x:2x2x1
jax: 0.10.0
libtpu: 0.0.40
codegen_flags: <defaults>
</compile_context>

<pallas_src>
import functools

import jax
import jax.numpy as jnp
from jax import lax
from jax.experimental import pallas as pl
from jax.experimental.pallas import tpu as pltpu

KS = 7            # conv kernel size
PAD = KS // 2     # padding = 3


# ----------------------------------------------------------------------------
# Conv-weight folding (runs once in the wrapper, outside the kernel).
# ----------------------------------------------------------------------------
def _build_full_conv_matrix(conv_weight, H, W):
    """Fold the zero-padded 7x7 conv over the 2-channel [avg|max] map into one
    banded (2*H*W, H*W) matrix T so that  out_flat = [avg_flat|max_flat] @ T.

    T[c*HW + ip*W + jp, i*W + j] = w[0, c, ip - i + PAD, jp - j + PAD] when the
    tap lies inside the 7x7 window, else 0 (reproduces zero padding).
    """
    w = conv_weight.astype(jnp.float32)[0]                        # (2, KS, KS)
    di = jnp.arange(H)[:, None] - jnp.arange(H)[None, :] + PAD    # (H_in, H_out)
    dj = jnp.arange(W)[:, None] - jnp.arange(W)[None, :] + PAD    # (W_in, W_out)
    vi = (di >= 0) & (di < KS)
    vj = (dj >= 0) & (dj < KS)
    dic = jnp.clip(di, 0, KS - 1)
    djc = jnp.clip(dj, 0, KS - 1)
    g = w[:, dic[:, :, None, None], djc[None, None, :, :]]        # (2,Hin,Hout,Win,Wout)
    valid = (vi[:, :, None, None] & vj[None, None, :, :])[None]
    g = jnp.where(valid, g, 0.0)
    g = jnp.transpose(g, (0, 1, 3, 2, 4))                         # (2,Hin,Win,Hout,Wout)
    return g.reshape(2 * H * W, H * W)


def _build_row_conv_matrices(conv_weight, W):
    """Per-row banded matrices for the large-spatial fallback path:
    T[di, c*W + k, j] = w[0, c, di, k - j + PAD] when inside the window."""
    w = conv_weight.astype(jnp.float32)[0]                        # (2, KS, KS)
    dj = jnp.arange(W)[:, None] - jnp.arange(W)[None, :] + PAD    # (W, W)
    valid = (dj >= 0) & (dj < KS)
    gathered = w[:, :, jnp.clip(dj, 0, KS - 1)]                   # (2, KS, W, W)
    gathered = jnp.where(valid[None, None], gathered, 0.0)
    return jnp.transpose(gathered, (1, 0, 2, 3)).reshape(KS, 2 * W, W)


def _row_shift(m, d, h):
    """Zero-filled shift of m (TB, H, K) along axis 1: out[:, i, :] = m[:, i+d, :]."""
    if d == 0:
        return m
    tb, _, kdim = m.shape
    zeros = jnp.zeros((tb, abs(d), kdim), m.dtype)
    if d > 0:
        return jnp.concatenate([m[:, d:, :], zeros], axis=1)
    return jnp.concatenate([zeros, m[:, : h + d, :]], axis=1)


# ----------------------------------------------------------------------------
# Kernel
# ----------------------------------------------------------------------------
def _spatial_attention_kernel(x_ref, t_ref, o_ref, sum8_ref, max8_ref, *,
                              C, TC, TB, H, W, fused):
    # x_ref:    (TB, TC, HW)   lane-dense channel chunk (native dtype)
    # t_ref:    (2*HW, HW)     fused banded conv matrix            [fused=True]
    #           (KS*2W, W)     per-row banded conv matrices        [fused=False]
    # o_ref:    (TB, 1, HW)    lane-dense output block (x.dtype)
    # sum8_ref: (TB, 8, HW)    sublane-parallel running channel sum (f32)
    # max8_ref: (TB, 8, HW)    sublane-parallel running channel max (f32)
    hw = H * W
    k = pl.program_id(1)

    # NOTE: correctness relies on the channel axis being the innermost,
    # sequential ("arbitrary") grid axis so k==0 fires before k>0 per batch blk.
    @pl.when(k == 0)
    def _():
        sum8_ref[...] = jnp.zeros(sum8_ref.shape, jnp.float32)
        max8_ref[...] = jnp.full(max8_ref.shape, -jnp.inf, jnp.float32)

    # ---- channel reduction over this chunk: aligned 8-channel sublane groups,
    #      full-vreg VPU adds/maxes into the 8-wide accumulators.
    n_grp = TC // 8
    rem = TC - n_grp * 8

    def _accum(xg):
        xg = xg.astype(jnp.float32)
        sum8_ref[...] = sum8_ref[...] + xg
        max8_ref[...] = jnp.maximum(max8_ref[...], xg)

    if n_grp > 0:
        if n_grp <= 8:
            for g in range(n_grp):                       # short static unroll
                _accum(x_ref[:, g * 8:(g + 1) * 8, :])
        else:
            def body(g, carry):                          # bounded vreg pressure
                start = pl.multiple_of(g * 8, 8)
                _accum(x_ref[:, pl.ds(start, 8), :])
                return carry
            lax.fori_loop(0, n_grp, body, 0, unroll=4)

    if rem > 0:                                          # only when TC == C, C % 8 != 0
        xr = x_ref[:, n_grp * 8:TC, :].astype(jnp.float32)
        sum8_ref[:, :rem, :] = sum8_ref[:, :rem, :] + xr
        max8_ref[:, :rem, :] = jnp.maximum(max8_ref[:, :rem, :], xr)

    # ---- last channel chunk: one cross-sublane reduce, one MXU matmul, sigmoid
    @pl.when(k == pl.num_programs(1) - 1)
    def _():
        avg = jnp.sum(sum8_ref[...], axis=1) * (1.0 / C)          # (TB, HW)
        mx = jnp.max(max8_ref[...], axis=1)                       # (TB, HW)
        if fused:
            maps = jnp.concatenate([avg, mx], axis=-1)            # (TB, 2*HW)
            # HIGHEST keeps the conv bit-close to the f32 reference; it is
            # epilogue-only so the extra MXU passes are negligible.
            conv = jnp.dot(maps, t_ref[...],
                           preferred_element_type=jnp.float32,
                           precision=lax.Precision.HIGHEST)       # (TB, HW)
        else:
            maps = jnp.concatenate(
                [avg.reshape(TB, H, W), mx.reshape(TB, H, W)], axis=-1)  # (TB,H,2W)
            shifted = [
                _row_shift(maps, di - PAD, H).reshape(TB * H, 2 * W)
                for di in range(KS)]
            cat = jnp.concatenate(shifted, axis=-1)               # (TB*H, KS*2W)
            conv = jnp.dot(cat, t_ref[...],
                           preferred_element_type=jnp.float32,
                           precision=lax.Precision.HIGHEST).reshape(TB, hw)
        o_ref[:, 0, :] = jax.nn.sigmoid(conv).astype(o_ref.dtype)


# ----------------------------------------------------------------------------
# Tiling / wrapper
# ----------------------------------------------------------------------------
def _vmem_capacity_bytes():
    try:
        info = pltpu.get_tpu_info()
        cap = int(getattr(info, "vmem_capacity_bytes", 0) or 0)
        if cap > 0:
            return cap
    except Exception:
        pass
    return 64 * 1024 * 1024          # conservative default (v7x per-core VMEM)


def _divisors_desc(n):
    return [d for d in range(n, 0, -1) if n % d == 0]


def _pick_tiles(N, C, HW, in_itemsize, t_bytes, budget):
    """Pick (TB, TC) maximizing the per-step input block within the VMEM
    budget, keeping >= 2 blocks along the parallel batch axis when N >= 2."""
    soft_cap = 16 << 20              # diminishing returns beyond ~16 MiB blocks

    def est(tb, tc):
        x_blk = 2 * tb * tc * HW * in_itemsize           # double-buffered input
        scratch = 2 * tb * 8 * HW * 4                    # sum8 + max8
        out_blk = 2 * tb * 8 * max(HW, 128) * 4          # padded output buffers
        return x_blk + scratch + out_blk + 2 * t_bytes + (4 << 20)

    tb_all = _divisors_desc(N)
    tb_cand = [d for d in tb_all if N // d >= 2] or tb_all
    tc_cand = [d for d in _divisors_desc(C) if d % 8 == 0 or d == C]

    best = None
    for tb in tb_cand:
        for tc in tc_cand:
            if est(tb, tc) > budget:
                continue
            blk = tb * tc * HW * in_itemsize
            key = (min(blk, soft_cap), -blk, tc)
            if best is None or key > best[0]:
                best = (key, tb, tc)
    if best is not None:
        return best[1], best[2]
    # Nothing fits the budget: fall back to the smallest legal tiles.
    return tb_cand[-1], tc_cand[-1]


def spatial_attention(x, conv_weight):
    """x: (N, C, H, W), any float dtype.  conv_weight: (1, 2, KS, KS).
    Returns sigmoid(conv7x7([mean_c(x), max_c(x)])) of shape (N, 1, H, W) in
    x.dtype (matching the PyTorch module)."""
    N, C, H, W = x.shape
    hw = H * W
    x_flat = x.reshape(N, C, hw)     # free for contiguous NCHW; keep native dtype

    # Fold the conv weights.  Small spatial maps -> one (2*HW, HW) banded
    # matrix (single MXU push on the lane-dense [avg|max] maps).
    fused = (2 * hw * hw * 4) <= (8 << 20)
    if fused:
        t = _build_full_conv_matrix(conv_weight, H, W)                 # (2*HW, HW)
        t_spec = pl.BlockSpec((2 * hw, hw), lambda n, k: (0, 0))
    else:
        t = _build_row_conv_matrices(conv_weight, W).reshape(KS * 2 * W, W)
        t_spec = pl.BlockSpec((KS * 2 * W, W), lambda n, k: (0, 0))
    t_bytes = int(t.size) * 4

    vmem_cap = _vmem_capacity_bytes()
    budget = min((vmem_cap * 3) // 4, 100 << 20)    # ~48 MiB v7x, ~96 MiB v5e/v6e
    in_itemsize = jnp.dtype(x.dtype).itemsize
    TB, TC = _pick_tiles(N, C, hw, in_itemsize, t_bytes, budget)

    kernel = functools.partial(_spatial_attention_kernel,
                               C=C, TC=TC, TB=TB, H=H, W=W, fused=fused)

    out3 = pl.pallas_call(
        kernel,
        out_shape=jax.ShapeDtypeStruct((N, 1, hw), x.dtype),
        grid_spec=pltpu.PrefetchScalarGridSpec(
            num_scalar_prefetch=0,
            # batch axis parallel (megacore), channel-reduction axis innermost.
            grid=(N // TB, C // TC),
            in_specs=[
                pl.BlockSpec((TB, TC, hw), lambda n, k: (n, k, 0)),
                t_spec,
            ],
            out_specs=pl.BlockSpec((TB, 1, hw), lambda n, k: (n, 0, 0)),
            scratch_shapes=[
                pltpu.VMEM((TB, 8, hw), jnp.float32),   # running channel sum (8-wide)
                pltpu.VMEM((TB, 8, hw), jnp.float32),   # running channel max (8-wide)
            ],
        ),
        compiler_params=pltpu.CompilerParams(
            dimension_semantics=("parallel", "arbitrary"),
            vmem_limit_bytes=int(budget),
        ),
    )(x_flat, t)

    return out3.reshape(N, 1, H, W)


# ----------------------------------------------------------------------------
# Reference + demo
# ----------------------------------------------------------------------------
def _reference(x, conv_weight):
    avg_out = jnp.mean(x, axis=1, keepdims=True)
    max_out = jnp.max(x, axis=1, keepdims=True)
    cat = jnp.concatenate([avg_out, max_out], axis=1)
    out = lax.conv_general_dilated(
        cat, conv_weight,
        window_strides=(1, 1),
        padding=[(PAD, PAD), (PAD, PAD)],
        dimension_numbers=("NCHW", "OIHW", "NCHW"),
        precision=lax.Precision.HIGHEST,
    )
    return jax.nn.sigmoid(out)


if __name__ == "__main__":
    key = jax.random.PRNGKey(0)
    kx, kw = jax.random.split(key)

    # Small deterministic example: batch=2, channels=4, spatial=16x16 (NCHW).
    N, C, H, W = 2, 4, 16, 16
    x = jax.random.normal(kx, (N, C, H, W), dtype=jnp.float32)

    # Deterministic conv weight init mimicking PyTorch's default Conv2d init:
    # uniform(-1/sqrt(fan_in), 1/sqrt(fan_in)), fan_in = 2 * 7 * 7.
    fan_in = 2 * KS * KS
    bound = 1.0 / jnp.sqrt(jnp.float32(fan_in))
    conv_weight = jax.random.uniform(
        kw, (1, 2, KS, KS), minval=-bound, maxval=bound, dtype=jnp.float32)

    out = spatial_attention(x, conv_weight)
    out = jax.block_until_ready(out)

    ref = _reference(x, conv_weight)
    assert out.shape == (N, 1, H, W), out.shape
    assert jnp.allclose(out.astype(jnp.float32), ref, atol=1e-5, rtol=1e-5), \
        "mismatch vs reference"

    print("KERNEL_OK")
</pallas_src>

<mosaic_0001>
module attributes {stable_mosaic.version = 11 : i64} {
  func.func @_spatial_attention_kernel(%arg0: i32, %arg1: i32, %arg2: memref<1x4x256xf32, #tpu.memory_space<vmem>>, %arg3: memref<512x256xf32, #tpu.memory_space<vmem>>, %arg4: memref<1x1x256xf32, #tpu.memory_space<vmem>>, %arg5: memref<1x8x256xf32, #tpu.memory_space<vmem>>, %arg6: memref<1x8x256xf32, #tpu.memory_space<vmem>>) attributes {dimension_semantics = [#tpu.dimension_semantics<parallel>, #tpu.dimension_semantics<arbitrary>], iteration_bounds = array<i64: 2, 1>, scalar_prefetch = 0 : i64, scratch_operands = 2 : i64, tpu.core_type = #tpu.core_type<tc>, window_params = [{transform_indices = @transform_0, window_bounds = array<i64: 1, 4, 256>}, {pipeline_mode = #tpu.pipeline_mode<synchronous>, transform_indices = @transform_1, window_bounds = array<i64: 512, 256>}, {transform_indices = @transform_2, window_bounds = array<i64: 1, 1, 256>}]} {
    %c0_i32 = arith.constant 0 : i32
    %0 = arith.cmpi eq, %arg1, %c0_i32 : i32
    %1 = arith.extui %0 : i1 to i32
    %c0_i32_0 = arith.constant 0 : i32
    %2 = arith.cmpi ne, %1, %c0_i32_0 : i32
    scf.if %2 {
      %cst = arith.constant 0.000000e+00 : f32
      %13 = vector.broadcast %cst : f32 to vector<1x8x256xf32>
      %c0_17 = arith.constant 0 : index
      %c0_18 = arith.constant 0 : index
      %c0_19 = arith.constant 0 : index
      %14 = vector.load %arg5[%c0_17, %c0_18, %c0_19] : memref<1x8x256xf32, #tpu.memory_space<vmem>>, vector<1x8x256xf32>
      tpu.vector_store %arg5[%c0_17, %c0_18, %c0_19], %13 {strides = array<i32>} : memref<1x8x256xf32, #tpu.memory_space<vmem>>, vector<1x8x256xf32>,
      %cst_20 = arith.constant 0xFF800000 : f32
      %15 = vector.broadcast %cst_20 : f32 to vector<1x8x256xf32>
      %c0_21 = arith.constant 0 : index
      %c0_22 = arith.constant 0 : index
      %c0_23 = arith.constant 0 : index
      %16 = vector.load %arg6[%c0_21, %c0_22, %c0_23] : memref<1x8x256xf32, #tpu.memory_space<vmem>>, vector<1x8x256xf32>
      tpu.vector_store %arg6[%c0_21, %c0_22, %c0_23], %15 {strides = array<i32>} : memref<1x8x256xf32, #tpu.memory_space<vmem>>, vector<1x8x256xf32>,
    } else {
    }
    %c0 = arith.constant 0 : index
    %c0_1 = arith.constant 0 : index
    %c0_2 = arith.constant 0 : index
    %3 = vector.load %arg2[%c0, %c0_1, %c0_2] : memref<1x4x256xf32, #tpu.memory_space<vmem>>, vector<1x4x256xf32>
    %c0_3 = arith.constant 0 : index
    %c0_4 = arith.constant 0 : index
    %c0_5 = arith.constant 0 : index
    %4 = vector.load %arg5[%c0_3, %c0_4, %c0_5] : memref<1x8x256xf32, #tpu.memory_space<vmem>>, vector<1x4x256xf32>
    %5 = arith.addf %4, %3 : vector<1x4x256xf32>
    %c0_6 = arith.constant 0 : index
    %c0_7 = arith.constant 0 : index
    %c0_8 = arith.constant 0 : index
    %6 = vector.load %arg5[%c0_6, %c0_7, %c0_8] : memref<1x8x256xf32, #tpu.memory_space<vmem>>, vector<1x4x256xf32>
    tpu.vector_store %arg5[%c0_6, %c0_7, %c0_8], %5 {strides = array<i32>} : memref<1x8x256xf32, #tpu.memory_space<vmem>>, vector<1x4x256xf32>,
    %c0_9 = arith.constant 0 : index
    %c0_10 = arith.constant 0 : index
    %c0_11 = arith.constant 0 : index
    %7 = vector.load %arg6[%c0_9, %c0_10, %c0_11] : memref<1x8x256xf32, #tpu.memory_space<vmem>>, vector<1x4x256xf32>
    %8 = arith.maximumf %7, %3 : vector<1x4x256xf32>
    %c0_12 = arith.constant 0 : index
    %c0_13 = arith.constant 0 : index
    %c0_14 = arith.constant 0 : index
    %9 = vector.load %arg6[%c0_12, %c0_13, %c0_14] : memref<1x8x256xf32, #tpu.memory_space<vmem>>, vector<1x4x256xf32>
    tpu.vector_store %arg6[%c0_12, %c0_13, %c0_14], %8 {strides = array<i32>} : memref<1x8x256xf32, #tpu.memory_space<vmem>>, vector<1x4x256xf32>,
    %c0_i32_15 = arith.constant 0 : i32
    %10 = arith.cmpi eq, %arg1, %c0_i32_15 : i32
    %11 = arith.extui %10 : i1 to i32
    %c0_i32_16 = arith.constant 0 : i32
    %12 = arith.cmpi ne, %11, %c0_i32_16 : i32
    scf.if %12 {
      %c0_17 = arith.constant 0 : index
      %c0_18 = arith.constant 0 : index
      %c0_19 = arith.constant 0 : index
      %13 = vector.load %arg5[%c0_17, %c0_18, %c0_19] : memref<1x8x256xf32, #tpu.memory_space<vmem>>, vector<1x8x256xf32>
      %cst = arith.constant dense<0.000000e+00> : vector<1x256xf32>
      %14 = vector.multi_reduction <add>, %13, %cst [1] : vector<1x8x256xf32> to vector<1x256xf32>
      %cst_20 = arith.constant 2.500000e-01 : f32
      %15 = vector.broadcast %cst_20 : f32 to vector<1x256xf32>
      %16 = arith.mulf %14, %15 : vector<1x256xf32>
      %c0_21 = arith.constant 0 : index
      %c0_22 = arith.constant 0 : index
      %c0_23 = arith.constant 0 : index
      %17 = vector.load %arg6[%c0_21, %c0_22, %c0_23] : memref<1x8x256xf32, #tpu.memory_space<vmem>>, vector<1x8x256xf32>
      %cst_24 = arith.constant dense<0xFF800000> : vector<1x256xf32>
      %18 = vector.multi_reduction <maximumf>, %17, %cst_24 [1] : vector<1x8x256xf32> to vector<1x256xf32>
      %19 = tpu.concatenate %16, %18 in 1 : vector<1x256xf32>, vector<1x256xf32> -> vector<1x512xf32>
      %c0_25 = arith.constant 0 : index
      %c0_26 = arith.constant 0 : index
      %20 = vector.load %arg3[%c0_25, %c0_26] : memref<512x256xf32, #tpu.memory_space<vmem>>, vector<512x256xf32>
      %cst_27 = arith.constant dense<0.000000e+00> : vector<1x256xf32>
      %21 = tpu.matmul %19, %20, %cst_27 {dimension_numbers = #tpu.dot_dimension_numbers<[1], [0], [0], [1], [0, 0, 1, 1], [], []>, precision = #tpu.contract_precision<fp32>} : vector<1x512xf32>, vector<512x256xf32>, vector<1x256xf32> -> vector<1x256xf32>
      %22 = arith.negf %21 : vector<1x256xf32>
      %23 = math.exp %22 : vector<1x256xf32>
      %cst_28 = arith.constant 1.000000e+00 : f32
      %24 = vector.broadcast %cst_28 : f32 to vector<1x256xf32>
      %25 = arith.addf %24, %23 : vector<1x256xf32>
      %26 = arith.divf %24, %25 : vector<1x256xf32>
      %c0_29 = arith.constant 0 : index
      %c0_30 = arith.constant 0 : index
      %c0_31 = arith.constant 0 : index
      %27 = vector.load %arg4[%c0_29, %c0_30, %c0_31] : memref<1x1x256xf32, #tpu.memory_space<vmem>>, vector<1x1x256xf32>
      %28 = vector.shape_cast %27 : vector<1x1x256xf32> to vector<1x256xf32>
      %29 = vector.shape_cast %26 : vector<1x256xf32> to vector<1x1x256xf32>
      tpu.vector_store %arg4[%c0_29, %c0_30, %c0_31], %29 {strides = array<i32>} : memref<1x1x256xf32, #tpu.memory_space<vmem>>, vector<1x1x256xf32>,
    } else {
    }
    return
  }
  func.func @transform_0(%arg0: i32, %arg1: i32) -> (i32, i32, i32) {
    %c0_i32 = arith.constant 0 : i32
    %c0_i32_0 = arith.constant 0 : i32
    return %arg0, %arg1, %c0_i32 : i32, i32, i32
  }
  func.func @transform_1(%arg0: i32, %arg1: i32) -> (i32, i32) {
    %c0_i32 = arith.constant 0 : i32
    %c0_i32_0 = arith.constant 0 : i32
    %c0_i32_1 = arith.constant 0 : i32
    return %c0_i32, %c0_i32_0 : i32, i32
  }
  func.func @transform_2(%arg0: i32, %arg1: i32) -> (i32, i32, i32) {
    %c0_i32 = arith.constant 0 : i32
    %c0_i32_0 = arith.constant 0 : i32
    %c0_i32_1 = arith.constant 0 : i32
    return %arg0, %c0_i32, %c0_i32_0 : i32, i32, i32
  }
}

</mosaic_0001>

<llo_original>
// kernel: tpu_custom_call.1
$region0: #{tpu_custom_call.1}
  #allocation0 [shape = 'u32[]', space=smem, size = 0x4, offset = 0x4, fixed_abs, tag = 'smem constant byte address 0x4 - core index']
  #allocation1 [shape = 'u32[144,128]{1,0:T(1,128)}', space=vmem, size = 0x12000, scoped, tag = 'internal scratch']
  #allocation2 [shape = 'f32[1,8,256]{2,1,0:T(8,128)}', space=vmem, size = 0x2000, scoped, tag = 'scratch operand']
  #allocation3 [shape = 'f32[1,8,256]{2,1,0:T(8,128)}', space=vmem, size = 0x2000, scoped, tag = 'scratch operand']
  %s0 = inlined_call_operand.hbm [shape: f32[2,4,256], index: 0, kind: input, shape index: {}]
  %s1 = inlined_call_operand.hbm [shape: f32[512,256], index: 1, kind: input, shape index: {}]
  %s2 = inlined_call_operand.hbm [shape: f32[2,1,256], index: 2, kind: output, shape index: {}]
  %s3 = sld [smem:[#allocation0]]
  $region57: #{tpu_custom_call.1} parent=0
    _
  %s5 = ssub.s32 1, %s3
  %s6 = scalar_select 0, %s5, %s3
  $region1: #{tpu_custom_call.1} parent=0
    #allocation4 [shape = 'u8[8192]{0}', space=vmem, size = 0x2000, scoped, tag = 'input window, operand 0']
    #allocation5 [shape = 's32[2]{0}', space=sflag, size = 0x8, scoped, tag = 'scoped memory for tpu_custom_call.1']
    #allocation6 [shape = 's32[2]{0}', space=sflag, size = 0x8, scoped, tag = 'scoped memory for tpu_custom_call.1']
    #allocation7 [shape = 'u8[524288]{0}', space=vmem, size = 0x80000, scoped, tag = 'input window, operand 1, single buffered']
    #allocation8 [shape = 's32[1]{0}', space=sflag, size = 0x4, scoped, tag = 'scoped memory for tpu_custom_call.1']
    #allocation9 [shape = 'u8[2048]{0}', space=vmem, size = 0x800, scoped, tag = 'output window, operand 0']
    %7 = vsyncpa [#allocation5], 0
    %s8 = scalar_lea.sflag [#allocation5], 1
    %9 = vsyncpa %s8, 0
    %10 = vsyncpa [#allocation8], 0
    %11 = vsyncpa [#allocation6], 0
    %s12 = scalar_lea.sflag [#allocation6], 1
    %13 = vsyncpa %s12, 0
    loop: start=0, step=1, limit=4
    $region2: #{tpu_custom_call.1} parent=1 // loop_pre_header
      _
    $region3: #{tpu_custom_call.1} parent=1 // loop_header
      %s15 = sphi 0, %s19
      %p16 = scmp.ge.s32.totalorder %s15, 4
      %s22 = sphi 0, %s34
      %s23 = sphi 0, %s30
      %s24 = sphi 0, %s22
      %s25 = sphi 0, %s23
      %s26 = sphi 0, %s24
      %s27 = sphi 0, %s25
      %s39 = sphi 0, %s41
      %s42 = sphi 0, %s39
      %s43 = sphi 0, %s42
      %s59 = sphi 0, %s43
      %s63 = sphi 0, %s63
      %s65 = sphi 0, %s63
      %s66 = sphi 0, %s65
      %s80 = sphi 0, %s66
      %s86 = sphi 0, %s88
      %s89 = sphi 0, %s86
      %s90 = sphi 0, %s89
      %s106 = sphi 0, %s90
    $region4: #{tpu_custom_call.1} parent=1 // loop_header_branch
      %18 = sbr.rel (%p16) target = $region8
    $region5: #{tpu_custom_call.1} parent=1 // loop_body
      %s20 = ssub.s32 %s15, 1
      %s21 = ssub.s32 %s15, 2
      %s28 = sadd.s32 1, %s23
      %p29 = scmp.ge.s32.totalorder %s28, 1
      %s30 = scalar_select %p29, 0, %s28
      %s31 = sadd.s32 1, %s22
      %s32 = scalar_select %p29, %s31, %s22
      %p33 = scmp.ge.s32.totalorder %s32, 2
      %s34 = scalar_select %p33, 0, %s32
      %s35 = ssub.s32 %s22, %s34
      %s36 = ssub.s32 %s23, %s30
      %s37 = sor.u32 %s35, %s36
      %p38 = scmp.eq.s32.totalorder %s37, 0
      %s40 = sadd.s32 %s39, 1
      %s41 = scalar_select %p38, %s39, %s40
      %p44 = pneg %p38
      %p45 = scmp.eq.s32.totalorder %s15, 1
      %p46 = por %p44, %p45
      %p47 = scmp.ne.s32.totalorder %s39, %s42
      %p48 = scmp.eq.s32.totalorder %s15, 0
      %p49 = por %p47, %p48
      %p50 = scmp.ne.s32.totalorder %s39, %s42
      %p51 = scmp.eq.s32.totalorder %s20, 1
      %p52 = por %p50, %p51
      %p53 = scmp.ne.s32.totalorder %s42, %s43
      %p54 = scmp.eq.s32.totalorder %s20, 0
      %p55 = por %p53, %p54
      %p56 = scmp.ne.s32.totalorder %s42, %s43
      %p57 = scmp.eq.s32.totalorder %s21, 1
      %p58 = por %p56, %p57
      %p60 = scmp.ne.s32.totalorder %s43, %s59
      %p61 = scmp.eq.s32.totalorder %s21, 0
      %p62 = por %p60, %p61
      %s64 = sadd.s32 %s63, 1
      %p67 = scmp.eq.s32.totalorder %s15, 1
      %p68 = scmp.ne.s32.totalorder %s63, %s65
      %p69 = scmp.eq.s32.totalorder %s15, 0
      %p70 = por %p68, %p69
      %p71 = scmp.ne.s32.totalorder %s63, %s65
      %p72 = scmp.eq.s32.totalorder %s20, 1
      %p73 = por %p71, %p72
      %p74 = scmp.ne.s32.totalorder %s65, %s66
      %p75 = scmp.eq.s32.totalorder %s20, 0
      %p76 = por %p74, %p75
      %p77 = scmp.ne.s32.totalorder %s65, %s66
      %p78 = scmp.eq.s32.totalorder %s21, 1
      %p79 = por %p77, %p78
      %p81 = scmp.ne.s32.totalorder %s66, %s80
      %p82 = scmp.eq.s32.totalorder %s21, 0
      %p83 = por %p81, %p82
      %s84 = ssub.s32 %s22, %s34
      %p85 = scmp.eq.s32.totalorder %s84, 0
      %s87 = sadd.s32 %s86, 1
      %s88 = scalar_select %p85, %s86, %s87
      %p91 = pneg %p85
      %p92 = scmp.eq.s32.totalorder %s15, 1
      %p93 = por %p91, %p92
      %p94 = scmp.ne.s32.totalorder %s86, %s89
      %p95 = scmp.eq.s32.totalorder %s15, 0
      %p96 = por %p94, %p95
      %p97 = scmp.ne.s32.totalorder %s86, %s89
      %p98 = scmp.eq.s32.totalorder %s20, 1
      %p99 = por %p97, %p98
      %p100 = scmp.ne.s32.totalorder %s89, %s90
      %p101 = scmp.eq.s32.totalorder %s20, 0
      %p102 = por %p100, %p101
      %p103 = scmp.ne.s32.totalorder %s89, %s90
      %p104 = scmp.eq.s32.totalorder %s21, 1
      %p105 = por %p103, %p104
      %p107 = scmp.ne.s32.totalorder %s90, %s106
      %p108 = scmp.eq.s32.totalorder %s21, 0
      %p109 = por %p107, %p108
      %p110 = scmp.le.s32.totalorder 1, %s15
      %p111 = scmp.lt.s32.totalorder %s15, 3
      %p112 = pnand %p110, %p111
      %p113 = pneg %p112
      // Predicated region
      $region9: #{tpu_custom_call.1} parent=5 // pred_check
        _
      $region10: #{tpu_custom_call.1} parent=5 // pred_check_branch
        %115 = sbr.rel (%p112) target = $region12
      $region11: #{tpu_custom_call.1} parent=5 // pred_region
        %s116 = ssub.s32 %s15, 1
        // Predicated region
        $region13: #{tpu_custom_call.1} parent=11 // pred_check
          %p117 = pneg %p76
        $region14: #{tpu_custom_call.1} parent=11 // pred_check_branch
          %119 = sbr.rel (%p117) target = $region16
        $region15: #{tpu_custom_call.1} parent=11 // pred_region
          %s121 = ssub.s32 16384, 16384
          %122 = vsyncadd [#allocation8], %s121
          %s123 = sshll.u32 [#allocation7], 4
          %s124 = int_to_ptr.vmem [resolvable:$true] %s123
          %129 = dma.hbm_to_vmem [thread:$0]  %s1, 16384, %s124, [#allocation8], 256, 256, 16
        $region16: #{tpu_custom_call.1} parent=11 // pred_fallthru
          _
      $region12: #{tpu_custom_call.1} parent=5 // pred_fallthru
        _
      %p130 = scmp.lt.s32.totalorder %s15, 2
      // Predicated region
      $region17: #{tpu_custom_call.1} parent=5 // pred_check
        %p131 = pneg %p130
      $region18: #{tpu_custom_call.1} parent=5 // pred_check_branch
        %133 = sbr.rel (%p131) target = $region20
      $region19: #{tpu_custom_call.1} parent=5 // pred_region
        // Predicated region
        $region21: #{tpu_custom_call.1} parent=19 // pred_check
          %p134 = pneg %p49
        $region22: #{tpu_custom_call.1} parent=19 // pred_check_branch
          %136 = sbr.rel (%p134) target = $region24
        $region23: #{tpu_custom_call.1} parent=19 // pred_region
          %s137 = sand.u32 %s39, 1
          %s138 = scalar_lea.sflag [#allocation5], %s137
          %s139 = sand.u32 %s39, 1
          %s140 = smul.addr %s139, 8
          %s141 = scalar_lea.vmem [#allocation4], %s140
          %s143 = ssub.s32 128, 128
          %144 = vsyncadd %s138, %s143
          %s145 = smul.addr %s23, 2
          %s146 = smul.addr %s22, 2
          %s147 = sadd.s32 %s145, %s146
          %s148 = smul.addr %s147, 64
          %s149 = scalar_lea.hbm %s0, %s148
          %s151 = sshll.u32 %s141, 4
          %s152 = int_to_ptr.vmem [resolvable:$true] %s151
          %154 = dma.hbm_to_vmem [thread:$0]  %s149, 128, %s152, %s138
        $region24: #{tpu_custom_call.1} parent=19 // pred_fallthru
          _
      $region20: #{tpu_custom_call.1} parent=5 // pred_fallthru
        _
      %p155 = scmp.le.s32.totalorder 1, %s15
      %p156 = scmp.lt.s32.totalorder %s15, 3
      %p157 = pnand %p155, %p156
      %p158 = pneg %p157
      // Predicated region
      $region25: #{tpu_custom_call.1} parent=5 // pred_check
        _
      $region26: #{tpu_custom_call.1} parent=5 // pred_check_branch
        %160 = sbr.rel (%p157) target = $region28
      $region27: #{tpu_custom_call.1} parent=5 // pred_region
        %s161 = ssub.s32 %s15, 1
        %s162 = sand.u32 %s42, 1
        %s163 = scalar_lea.sflag [#allocation5], %s162
        %s164 = sand.u32 %s42, 1
        %s165 = smul.addr %s164, 8
        %s166 = scalar_lea.vmem [#allocation4], %s165
        // Predicated region
        $region29: #{tpu_custom_call.1} parent=27 // pred_check
          %p167 = pneg %p55
        $region30: #{tpu_custom_call.1} parent=27 // pred_check_branch
          %169 = sbr.rel (%p167) target = $region32
        $region31: #{tpu_custom_call.1} parent=27 // pred_region
          %170 = dma.done %s163, 128
        $region32: #{tpu_custom_call.1} parent=27 // pred_fallthru
          _
        // Predicated region
        $region33: #{tpu_custom_call.1} parent=27 // pred_check
          %p171 = pneg %p76
        $region34: #{tpu_custom_call.1} parent=27 // pred_check_branch
          %173 = sbr.rel (%p171) target = $region36
        $region35: #{tpu_custom_call.1} parent=27 // pred_region
          %174 = dma.done [#allocation8], 16384
        $region36: #{tpu_custom_call.1} parent=27 // pred_fallthru
          _
        %s175 = sand.u32 %s42, 1
        %s176 = scalar_lea.sflag [#allocation5], %s175
        %s177 = sand.u32 %s42, 1
        %s178 = smul.addr %s177, 8
        %s179 = scalar_lea.vmem [#allocation4], %s178
        %p180 = pneg %p55
        %p181 = pneg %p52
        %p182 = pneg %p76
        %p183 = pneg %p73
        %p184 = pneg %p102
        %p185 = pneg %p99
        %s186 = sand.u32 %s89, 1
        %s187 = scalar_lea.sflag [#allocation6], %s186
        %s188 = sand.u32 %s89, 1
        %s189 = smul.addr %s188, 2
        %s190 = scalar_lea.vmem [#allocation9], %s189
        %p191 = scmp.eq.s32.totalorder %s25, 0
        // Predicated region
        $region37: #{tpu_custom_call.1} parent=27 // pred_check
          %p192 = pneg %p191
        $region38: #{tpu_custom_call.1} parent=27 // pred_check_branch
          %194 = sbr.rel (%p192) target = $region40
        $region39: #{tpu_custom_call.1} parent=27 // pred_region
          %195 = vst [vmem:[#allocation2] sm:$0xff] 0.0
          %196 = vst [vmem:[#allocation2 + $0x8] sm:$0xff] 0.0
          %197 = vst [vmem:[#allocation3] sm:$0xff] -inf
          %198 = vst [vmem:[#allocation3 + $0x8] sm:$0xff] -inf
        $region40: #{tpu_custom_call.1} parent=27 // pred_fallthru
          _
        %v199 = vld [vmem:[%s166] sm:$0xff]
        %v200 = vld [vmem:[#allocation2] sm:$0xf]
        %v201 = vld [vmem:[#allocation2 + $0x8] sm:$0xf]
        %v203 = vcombine.high %v199, %v199
        %v205 = vadd.f32 %v200, %v199
        %v206 = vadd.f32 %v201, %v203
        %207 = vst [vmem:[#allocation2] sm:$0xf] %v205
        %208 = vst [vmem:[#allocation2 + $0x8] sm:$0xf] %v206
        %v209 = vld [vmem:[#allocation3] sm:$0xf]
        %v210 = vld [vmem:[#allocation3 + $0x8] sm:$0xf]
        %v211 = vmax.f32 %v209, %v199
        %v212 = vmax.f32 %v210, %v203
        %213 = vst [vmem:[#allocation3] sm:$0xf] %v211
        %214 = vst [vmem:[#allocation3 + $0x8] sm:$0xf] %v212
        // Predicated region
        $region41: #{tpu_custom_call.1} parent=27 // pred_check
          %p215 = pneg %p191
        $region42: #{tpu_custom_call.1} parent=27 // pred_check_branch
          %217 = sbr.rel (%p215) target = $region44
        $region43: #{tpu_custom_call.1} parent=27 // pred_region
          %v218 = vld [vmem:[#allocation2] sm:$0xff]
          %v219 = vld [vmem:[#allocation2 + $0x8] sm:$0xff]
          %v220 = vrot.slane %v218, 4
          %v221 = vadd.f32 %v218, %v220
          %v222 = vrot.slane %v221, 2
          %v223 = vadd.f32 %v221, %v222
          %v224 = vrot.slane %v223, 1
          %v225 = vadd.f32 %v223, %v224
          %v226 = vrot.slane %v219, 4
          %v227 = vadd.f32 %v219, %v226
          %v228 = vrot.slane %v227, 2
          %v229 = vadd.f32 %v227, %v228
          %v230 = vrot.slane %v229, 1
          %v231 = vadd.f32 %v229, %v230
          %v232 = vmul.f32 %v225, 0.25
          %v233 = vmul.f32 %v231, 0.25
          %v234 = vld [vmem:[#allocation3] sm:$0xff]
          %v235 = vld [vmem:[#allocation3 + $0x8] sm:$0xff]
          %v236 = vrot.slane %v234, 4
          %v237 = vmax.f32 %v234, %v236
          %v238 = vrot.slane %v237, 2
          %v239 = vmax.f32 %v237, %v238
          %v240 = vrot.slane %v239, 1
          %v241 = vmax.f32 %v239, %v240
          %v242 = vrot.slane %v235, 4
          %v243 = vmax.f32 %v235, %v242
          %v244 = vrot.slane %v243, 2
          %v245 = vmax.f32 %v243, %v244
          %v246 = vrot.slane %v245, 1
          %v247 = vmax.f32 %v245, %v246
          %v248 = vld [vmem:[#allocation7] sm:$0xff]
          %v249 = vld [vmem:[#allocation7 + $0x8] sm:$0xff]
          %v250 = vld [vmem:[#allocation7 + $0x10] sm:$0xff]
          %v251 = vld [vmem:[#allocation7 + $0x18] sm:$0xff]
          %v252 = vld [vmem:[#allocation7 + $0x20] sm:$0xff]
          %v253 = vld [vmem:[#allocation7 + $0x28] sm:$0xff]
          %v254 = vld [vmem:[#allocation7 + $0x30] sm:$0xff]
          %v255 = vld [vmem:[#allocation7 + $0x38] sm:$0xff]
          %v256 = vld [vmem:[#allocation7 + $0x40] sm:$0xff]
          %v257 = vld [vmem:[#allocation7 + $0x48] sm:$0xff]
          %v258 = vld [vmem:[#allocation7 + $0x50] sm:$0xff]
          %v259 = vld [vmem:[#allocation7 + $0x58] sm:$0xff]
          %v260 = vld [vmem:[#allocation7 + $0x60] sm:$0xff]
          %v261 = vld [vmem:[#allocation7 + $0x68] sm:$0xff]
          %v262 = vld [vmem:[#allocation7 + $0x70] sm:$0xff]
          %v263 = vld [vmem:[#allocation7 + $0x78] sm:$0xff]
          %v264 = vld [vmem:[#allocation7 + $0x80] sm:$0xff]
          %v265 = vld [vmem:[#allocation7 + $0x88] sm:$0xff]
          %v266 = vld [vmem:[#allocation7 + $0x90] sm:$0xff]
          %v267 = vld [vmem:[#allocation7 + $0x98] sm:$0xff]
          %v268 = vld [vmem:[#allocation7 + $0xa0] sm:$0xff]
          %v269 = vld [vmem:[#allocation7 + $0xa8] sm:$0xff]
          %v270 = vld [vmem:[#allocation7 + $0xb0] sm:$0xff]
          %v271 = vld [vmem:[#allocation7 + $0xb8] sm:$0xff]
          %v272 = vld [vmem:[#allocation7 + $0xc0] sm:$0xff]
          %v273 = vld [vmem:[#allocation7 + $0xc8] sm:$0xff]
          %v274 = vld [vmem:[#allocation7 + $0xd0] sm:$0xff]
          %v275 = vld [vmem:[#allocation7 + $0xd8] sm:$0xff]
          %v276 = vld [vmem:[#allocation7 + $0xe0] sm:$0xff]
          %v277 = vld [vmem:[#allocation7 + $0xe8] sm:$0xff]
          %v278 = vld [vmem:[#allocation7 + $0xf0] sm:$0xff]
          %v279 = vld [vmem:[#allocation7 + $0xf8] sm:$0xff]
          %v280 = vld [vmem:[#allocation7 + $0x100] sm:$0xff]
          %v281 = vld [vmem:[#allocation7 + $0x108] sm:$0xff]
          %v282 = vld [vmem:[#allocation7 + $0x110] sm:$0xff]
          %v283 = vld [vmem:[#allocation7 + $0x118] sm:$0xff]
          %v284 = vld [vmem:[#allocation7 + $0x120] sm:$0xff]
          %v285 = vld [vmem:[#allocation7 + $0x128] sm:$0xff]
          %v286 = vld [vmem:[#allocation7 + $0x130] sm:$0xff]
          %v287 = vld [vmem:[#allocation7 + $0x138] sm:$0xff]
          %v288 = vld [vmem:[#allocation7 + $0x140] sm:$0xff]
          %v289 = vld [vmem:[#allocation7 + $0x148] sm:$0xff]
          %v290 = vld [vmem:[#allocation7 + $0x150] sm:$0xff]
          %v291 = vld [vmem:[#allocation7 + $0x158] sm:$0xff]
          %v292 = vld [vmem:[#allocation7 + $0x160] sm:$0xff]
          %v293 = vld [vmem:[#allocation7 + $0x168] sm:$0xff]
          %v294 = vld [vmem:[#allocation7 + $0x170] sm:$0xff]
          %v295 = vld [vmem:[#allocation7 + $0x178] sm:$0xff]
          %v296 = vld [vmem:[#allocation7 + $0x180] sm:$0xff]
          %v297 = vld [vmem:[#allocation7 + $0x188] sm:$0xff]
          %v298 = vld [vmem:[#allocation7 + $0x190] sm:$0xff]
          %v299 = vld [vmem:[#allocation7 + $0x198] sm:$0xff]
          %v300 = vld [vmem:[#allocation7 + $0x1a0] sm:$0xff]
          %v301 = vld [vmem:[#allocation7 + $0x1a8] sm:$0xff]
          %v302 = vld [vmem:[#allocation7 + $0x1b0] sm:$0xff]
          %v303 = vld [vmem:[#allocation7 + $0x1b8] sm:$0xff]
          %v304 = vld [vmem:[#allocation7 + $0x1c0] sm:$0xff]
          %v305 = vld [vmem:[#allocation7 + $0x1c8] sm:$0xff]
          %v306 = vld [vmem:[#allocation7 + $0x1d0] sm:$0xff]
          %v307 = vld [vmem:[#allocation7 + $0x1d8] sm:$0xff]
          %v308 = vld [vmem:[#allocation7 + $0x1e0] sm:$0xff]
          %v309 = vld [vmem:[#allocation7 + $0x1e8] sm:$0xff]
          %v310 = vld [vmem:[#allocation7 + $0x1f0] sm:$0xff]
          %v311 = vld [vmem:[#allocation7 + $0x1f8] sm:$0xff]
          %v312 = vld [vmem:[#allocation7 + $0x200] sm:$0xff]
          %v313 = vld [vmem:[#allocation7 + $0x208] sm:$0xff]
          %v314 = vld [vmem:[#allocation7 + $0x210] sm:$0xff]
          %v315 = vld [vmem:[#allocation7 + $0x218] sm:$0xff]
          %v316 = vld [vmem:[#allocation7 + $0x220] sm:$0xff]
          %v317 = vld [vmem:[#allocation7 + $0x228] sm:$0xff]
          %v318 = vld [vmem:[#allocation7 + $0x230] sm:$0xff]
          %v319 = vld [vmem:[#allocation7 + $0x238] sm:$0xff]
          %v320 = vld [vmem:[#allocation7 + $0x240] sm:$0xff]
          %v321 = vld [vmem:[#allocation7 + $0x248] sm:$0xff]
          %v322 = vld [vmem:[#allocation7 + $0x250] sm:$0xff]
          %v323 = vld [vmem:[#allocation7 + $0x258] sm:$0xff]
          %v324 = vld [vmem:[#allocation7 + $0x260] sm:$0xff]
          %v325 = vld [vmem:[#allocation7 + $0x268] sm:$0xff]
          %v326 = vld [vmem:[#allocation7 + $0x270] sm:$0xff]
          %v327 = vld [vmem:[#allocation7 + $0x278] sm:$0xff]
          %v328 = vld [vmem:[#allocation7 + $0x280] sm:$0xff]
          %v329 = vld [vmem:[#allocation7 + $0x288] sm:$0xff]
          %v330 = vld [vmem:[#allocation7 + $0x290] sm:$0xff]
          %v331 = vld [vmem:[#allocation7 + $0x298] sm:$0xff]
          %v332 = vld [vmem:[#allocation7 + $0x2a0] sm:$0xff]
          %v333 = vld [vmem:[#allocation7 + $0x2a8] sm:$0xff]
          %v334 = vld [vmem:[#allocation7 + $0x2b0] sm:$0xff]
          %v335 = vld [vmem:[#allocation7 + $0x2b8] sm:$0xff]
          %v336 = vld [vmem:[#allocation7 + $0x2c0] sm:$0xff]
          %v337 = vld [vmem:[#allocation7 + $0x2c8] sm:$0xff]
          %v338 = vld [vmem:[#allocation7 + $0x2d0] sm:$0xff]
          %v339 = vld [vmem:[#allocation7 + $0x2d8] sm:$0xff]
          %v340 = vld [vmem:[#allocation7 + $0x2e0] sm:$0xff]
          %v341 = vld [vmem:[#allocation7 + $0x2e8] sm:$0xff]
          %v342 = vld [vmem:[#allocation7 + $0x2f0] sm:$0xff]
          %v343 = vld [vmem:[#allocation7 + $0x2f8] sm:$0xff]
          %v344 = vld [vmem:[#allocation7 + $0x300] sm:$0xff]
          %v345 = vld [vmem:[#allocation7 + $0x308] sm:$0xff]
          %v346 = vld [vmem:[#allocation7 + $0x310] sm:$0xff]
          %v347 = vld [vmem:[#allocation7 + $0x318] sm:$0xff]
          %v348 = vld [vmem:[#allocation7 + $0x320] sm:$0xff]
          %v349 = vld [vmem:[#allocation7 + $0x328] sm:$0xff]
          %v350 = vld [vmem:[#allocation7 + $0x330] sm:$0xff]
          %v351 = vld [vmem:[#allocation7 + $0x338] sm:$0xff]
          %v352 = vld [vmem:[#allocation7 + $0x340] sm:$0xff]
          %v353 = vld [vmem:[#allocation7 + $0x348] sm:$0xff]
          %v354 = vld [vmem:[#allocation7 + $0x350] sm:$0xff]
          %v355 = vld [vmem:[#allocation7 + $0x358] sm:$0xff]
          %v356 = vld [vmem:[#allocation7 + $0x360] sm:$0xff]
          %v357 = vld [vmem:[#allocation7 + $0x368] sm:$0xff]
          %v358 = vld [vmem:[#allocation7 + $0x370] sm:$0xff]
          %v359 = vld [vmem:[#allocation7 + $0x378] sm:$0xff]
          %v360 = vld [vmem:[#allocation7 + $0x380] sm:$0xff]
          %v361 = vld [vmem:[#allocation7 + $0x388] sm:$0xff]
          %v362 = vld [vmem:[#allocation7 + $0x390] sm:$0xff]
          %v363 = vld [vmem:[#allocation7 + $0x398] sm:$0xff]
          %v364 = vld [vmem:[#allocation7 + $0x3a0] sm:$0xff]
          %v365 = vld [vmem:[#allocation7 + $0x3a8] sm:$0xff]
          %v366 = vld [vmem:[#allocation7 + $0x3b0] sm:$0xff]
          %v367 = vld [vmem:[#allocation7 + $0x3b8] sm:$0xff]
          %v368 = vld [vmem:[#allocation7 + $0x3c0] sm:$0xff]
          %v369 = vld [vmem:[#allocation7 + $0x3c8] sm:$0xff]
          %v370 = vld [vmem:[#allocation7 + $0x3d0] sm:$0xff]
          %v371 = vld [vmem:[#allocation7 + $0x3d8] sm:$0xff]
          %v372 = vld [vmem:[#allocation7 + $0x3e0] sm:$0xff]
          %v373 = vld [vmem:[#allocation7 + $0x3e8] sm:$0xff]
          %v374 = vld [vmem:[#allocation7 + $0x3f0] sm:$0xff]
          %v375 = vld [vmem:[#allocation7 + $0x3f8] sm:$0xff]
          %v376 = vand.u32 %v249, 4294901760
          %377 = vmatprep.subr.mxu0 %v376
          %v378 = vand.u32 %v248, 4294901760
          %379 = vmatpush1.msra.mxu0 %v378
          %v380 = vand.u32 %v251, 4294901760
          %381 = vmatprep.subr.mxu0 %v380
          %v382 = vand.u32 %v250, 4294901760
          %383 = vmatpush1.msra.mxu0 %v382
          %v384 = vand.u32 %v253, 4294901760
          %385 = vmatprep.subr.mxu0 %v384
          %v386 = vand.u32 %v252, 4294901760
          %387 = vmatpush1.msra.mxu0 %v386
          %v388 = vand.u32 %v255, 4294901760
          %389 = vmatprep.subr.mxu0 %v388
          %v390 = vand.u32 %v254, 4294901760
          %391 = vmatpush1.msra.mxu0 %v390
          %v392 = vand.u32 %v257, 4294901760
          %393 = vmatprep.subr.mxu0 %v392
          %v394 = vand.u32 %v256, 4294901760
          %395 = vmatpush1.msra.mxu0 %v394
          %v396 = vand.u32 %v259, 4294901760
          %397 = vmatprep.subr.mxu0 %v396
          %v398 = vand.u32 %v258, 4294901760
          %399 = vmatpush1.msra.mxu0 %v398
          %v400 = vand.u32 %v261, 4294901760
          %401 = vmatprep.subr.mxu0 %v400
          %v402 = vand.u32 %v260, 4294901760
          %403 = vmatpush1.msra.mxu0 %v402
          %v404 = vand.u32 %v263, 4294901760
          %405 = vmatprep.subr.mxu0 %v404
          %v406 = vand.u32 %v262, 4294901760
          %407 = vmatpush1.msra.mxu0 %v406
          %v408 = vand.u32 %v265, 4294901760
          %409 = vmatprep.subr.mxu0 %v408
          %v410 = vand.u32 %v264, 4294901760
          %411 = vmatpush1.msra.mxu0 %v410
          %v412 = vand.u32 %v267, 4294901760
          %413 = vmatprep.subr.mxu0 %v412
          %v414 = vand.u32 %v266, 4294901760
          %415 = vmatpush1.msra.mxu0 %v414
          %v416 = vand.u32 %v269, 4294901760
          %417 = vmatprep.subr.mxu0 %v416
          %v418 = vand.u32 %v268, 4294901760
          %419 = vmatpush1.msra.mxu0 %v418
          %v420 = vand.u32 %v271, 4294901760
          %421 = vmatprep.subr.mxu0 %v420
          %v422 = vand.u32 %v270, 4294901760
          %423 = vmatpush1.msra.mxu0 %v422
          %v424 = vand.u32 %v273, 4294901760
          %425 = vmatprep.subr.mxu0 %v424
          %v426 = vand.u32 %v272, 4294901760
          %427 = vmatpush1.msra.mxu0 %v426
          %v428 = vand.u32 %v275, 4294901760
          %429 = vmatprep.subr.mxu0 %v428
          %v430 = vand.u32 %v274, 4294901760
          %431 = vmatpush1.msra.mxu0 %v430
          %v432 = vand.u32 %v277, 4294901760
          %433 = vmatprep.subr.mxu0 %v432
          %v434 = vand.u32 %v276, 4294901760
          %435 = vmatpush1.msra.mxu0 %v434
          %v436 = vand.u32 %v279, 4294901760
          %437 = vmatprep.subr.mxu0 %v436
          %v438 = vand.u32 %v278, 4294901760
          %439 = vmatpush1.msra.mxu0 %v438
          %v440 = vand.u32 %v281, 4294901760
          %441 = vmatprep.subr.mxu0 %v440
          %v442 = vand.u32 %v280, 4294901760
          %443 = vmatpush1.msra.mxu0 %v442
          %v444 = vand.u32 %v283, 4294901760
          %445 = vmatprep.subr.mxu0 %v444
          %v446 = vand.u32 %v282, 4294901760
          %447 = vmatpush1.msra.mxu0 %v446
          %v448 = vand.u32 %v285, 4294901760
          %449 = vmatprep.subr.mxu0 %v448
          %v450 = vand.u32 %v284, 4294901760
          %451 = vmatpush1.msra.mxu0 %v450
          %v452 = vand.u32 %v287, 4294901760
          %453 = vmatprep.subr.mxu0 %v452
          %v454 = vand.u32 %v286, 4294901760
          %455 = vmatpush1.msra.mxu0 %v454
          %v456 = vand.u32 %v289, 4294901760
          %457 = vmatprep.subr.mxu0 %v456
          %v458 = vand.u32 %v288, 4294901760
          %459 = vmatpush1.msra.mxu0 %v458
          %v460 = vand.u32 %v291, 4294901760
          %461 = vmatprep.subr.mxu0 %v460
          %v462 = vand.u32 %v290, 4294901760
          %463 = vmatpush1.msra.mxu0 %v462
          %v464 = vand.u32 %v293, 4294901760
          %465 = vmatprep.subr.mxu0 %v464
          %v466 = vand.u32 %v292, 4294901760
          %467 = vmatpush1.msra.mxu0 %v466
          %v468 = vand.u32 %v295, 4294901760
          %469 = vmatprep.subr.mxu0 %v468
          %v470 = vand.u32 %v294, 4294901760
          %471 = vmatpush1.msra.mxu0 %v470
          %v472 = vand.u32 %v297, 4294901760
          %473 = vmatprep.subr.mxu0 %v472
          %v474 = vand.u32 %v296, 4294901760
          %475 = vmatpush1.msra.mxu0 %v474
          %v476 = vand.u32 %v299, 4294901760
          %477 = vmatprep.subr.mxu0 %v476
          %v478 = vand.u32 %v298, 4294901760
          %479 = vmatpush1.msra.mxu0 %v478
          %v480 = vand.u32 %v301, 4294901760
          %481 = vmatprep.subr.mxu0 %v480
          %v482 = vand.u32 %v300, 4294901760
          %483 = vmatpush1.msra.mxu0 %v482
          %v484 = vand.u32 %v303, 4294901760
          %485 = vmatprep.subr.mxu0 %v484
          %v486 = vand.u32 %v302, 4294901760
          %487 = vmatpush1.msra.mxu0 %v486
          %v488 = vand.u32 %v305, 4294901760
          %489 = vmatprep.subr.mxu0 %v488
          %v490 = vand.u32 %v304, 4294901760
          %491 = vmatpush1.msra.mxu0 %v490
          %v492 = vand.u32 %v307, 4294901760
          %493 = vmatprep.subr.mxu0 %v492
          %v494 = vand.u32 %v306, 4294901760
          %495 = vmatpush1.msra.mxu0 %v494
          %v496 = vand.u32 %v309, 4294901760
          %497 = vmatprep.subr.mxu0 %v496
          %v498 = vand.u32 %v308, 4294901760
          %499 = vmatpush1.msra.mxu0 %v498
          %v500 = vand.u32 %v311, 4294901760
          %501 = vmatprep.subr.mxu0 %v500
          %v502 = vand.u32 %v310, 4294901760
          %503 = vmatpush1.msra.mxu0 %v502
          %v504 = vand.u32 %v233, 4294901760
          %v505 = vsub.f32 %v233, %v504
          %v506 = vand.u32 %v505, 4294901760
          %v507 = vsub.f32 %v505, %v506
          %v508 = vand.u32 %v507, 4294901760
          %509 = vmatprep.mubr.f32.mxu0 %v508
          %v510 = vand.u32 %v232, 4294901760
          %v511 = vsub.f32 %v232, %v510
          %v512 = vand.u32 %v511, 4294901760
          %v513 = vsub.f32 %v511, %v512
          %v514 = vand.u32 %v513, 4294901760
          %515 = vmatmul.mubr.f32.gmra.mrb[0].mxu0 %v514
          %v516 = vpop.f32.mrb[0].mxu0
          %v517 = vadd.f32 0.0, %v516
          %v518 = vpop.f32.mrb[0].mxu0
          %v519 = vadd.f32 0.0, %v518
          %520 = vdwg.mxu0
          %v521 = vand.u32 %v249, 4294901760
          %v522 = vsub.f32 %v249, %v521
          %v523 = vand.u32 %v522, 4294901760
          %v524 = vsub.f32 %v522, %v523
          %v525 = vand.u32 %v524, 4294901760
          %526 = vmatprep.subr.mxu0 %v525
          %v527 = vand.u32 %v248, 4294901760
          %v528 = vsub.f32 %v248, %v527
          %v529 = vand.u32 %v528, 4294901760
          %v530 = vsub.f32 %v528, %v529
          %v531 = vand.u32 %v530, 4294901760
          %532 = vmatpush1.msra.mxu0 %v531
          %v533 = vand.u32 %v251, 4294901760
          %v534 = vsub.f32 %v251, %v533
          %v535 = vand.u32 %v534, 4294901760
          %v536 = vsub.f32 %v534, %v535
          %v537 = vand.u32 %v536, 4294901760
          %538 = vmatprep.subr.mxu0 %v537
          %v539 = vand.u32 %v250, 4294901760
          %v540 = vsub.f32 %v250, %v539
          %v541 = vand.u32 %v540, 4294901760
          %v542 = vsub.f32 %v540, %v541
          %v543 = vand.u32 %v542, 4294901760
          %544 = vmatpush1.msra.mxu0 %v543
          %v545 = vand.u32 %v253, 4294901760
          %v546 = vsub.f32 %v253, %v545
          %v547 = vand.u32 %v546, 4294901760
          %v548 = vsub.f32 %v546, %v547
          %v549 = vand.u32 %v548, 4294901760
          %550 = vmatprep.subr.mxu0 %v549
          %v551 = vand.u32 %v252, 4294901760
          %v552 = vsub.f32 %v252, %v551
          %v553 = vand.u32 %v552, 4294901760
          %v554 = vsub.f32 %v552, %v553
          %v555 = vand.u32 %v554, 4294901760
          %556 = vmatpush1.msra.mxu0 %v555
          %v557 = vand.u32 %v255, 4294901760
          %v558 = vsub.f32 %v255, %v557
          %v559 = vand.u32 %v558, 4294901760
          %v560 = vsub.f32 %v558, %v559
          %v561 = vand.u32 %v560, 4294901760
          %562 = vmatprep.subr.mxu0 %v561
          %v563 = vand.u32 %v254, 4294901760
          %v564 = vsub.f32 %v254, %v563
          %v565 = vand.u32 %v564, 4294901760
          %v566 = vsub.f32 %v564, %v565
          %v567 = vand.u32 %v566, 4294901760
          %568 = vmatpush1.msra.mxu0 %v567
          %v569 = vand.u32 %v257, 4294901760
          %v570 = vsub.f32 %v257, %v569
          %v571 = vand.u32 %v570, 4294901760
          %v572 = vsub.f32 %v570, %v571
          %v573 = vand.u32 %v572, 4294901760
          %574 = vmatprep.subr.mxu0 %v573
          %v575 = vand.u32 %v256, 4294901760
          %v576 = vsub.f32 %v256, %v575
          %v577 = vand.u32 %v576, 4294901760
          %v578 = vsub.f32 %v576, %v577
          %v579 = vand.u32 %v578, 4294901760
          %580 = vmatpush1.msra.mxu0 %v579
          %v581 = vand.u32 %v259, 4294901760
          %v582 = vsub.f32 %v259, %v581
          %v583 = vand.u32 %v582, 4294901760
          %v584 = vsub.f32 %v582, %v583
          %v585 = vand.u32 %v584, 4294901760
          %586 = vmatprep.subr.mxu0 %v585
          %v587 = vand.u32 %v258, 4294901760
          %v588 = vsub.f32 %v258, %v587
          %v589 = vand.u32 %v588, 4294901760
          %v590 = vsub.f32 %v588, %v589
          %v591 = vand.u32 %v590, 4294901760
          %592 = vmatpush1.msra.mxu0 %v591
          %v593 = vand.u32 %v261, 4294901760
          %v594 = vsub.f32 %v261, %v593
          %v595 = vand.u32 %v594, 4294901760
          %v596 = vsub.f32 %v594, %v595
          %v597 = vand.u32 %v596, 4294901760
          %598 = vmatprep.subr.mxu0 %v597
          %v599 = vand.u32 %v260, 4294901760
          %v600 = vsub.f32 %v260, %v599
          %v601 = vand.u32 %v600, 4294901760
          %v602 = vsub.f32 %v600, %v601
          %v603 = vand.u32 %v602, 4294901760
          %604 = vmatpush1.msra.mxu0 %v603
          %v605 = vand.u32 %v263, 4294901760
          %v606 = vsub.f32 %v263, %v605
          %v607 = vand.u32 %v606, 4294901760
          %v608 = vsub.f32 %v606, %v607
          %v609 = vand.u32 %v608, 4294901760
          %610 = vmatprep.subr.mxu0 %v609
          %v611 = vand.u32 %v262, 4294901760
          %v612 = vsub.f32 %v262, %v611
          %v613 = vand.u32 %v612, 4294901760
          %v614 = vsub.f32 %v612, %v613
          %v615 = vand.u32 %v614, 4294901760
          %616 = vmatpush1.msra.mxu0 %v615
          %v617 = vand.u32 %v265, 4294901760
          %v618 = vsub.f32 %v265, %v617
          %v619 = vand.u32 %v618, 4294901760
          %v620 = vsub.f32 %v618, %v619
          %v621 = vand.u32 %v620, 4294901760
          %622 = vmatprep.subr.mxu0 %v621
          %v623 = vand.u32 %v264, 4294901760
          %v624 = vsub.f32 %v264, %v623
          %v625 = vand.u32 %v624, 4294901760
          %v626 = vsub.f32 %v624, %v625
          %v627 = vand.u32 %v626, 4294901760
          %628 = vmatpush1.msra.mxu0 %v627
          %v629 = vand.u32 %v267, 4294901760
          %v630 = vsub.f32 %v267, %v629
          %v631 = vand.u32 %v630, 4294901760
          %v632 = vsub.f32 %v630, %v631
          %v633 = vand.u32 %v632, 4294901760
          %634 = vmatprep.subr.mxu0 %v633
          %v635 = vand.u32 %v266, 4294901760
          %v636 = vsub.f32 %v266, %v635
          %v637 = vand.u32 %v636, 4294901760
          %v638 = vsub.f32 %v636, %v637
          %v639 = vand.u32 %v638, 4294901760
          %640 = vmatpush1.msra.mxu0 %v639
          %v641 = vand.u32 %v269, 4294901760
          %v642 = vsub.f32 %v269, %v641
          %v643 = vand.u32 %v642, 4294901760
          %v644 = vsub.f32 %v642, %v643
          %v645 = vand.u32 %v644, 4294901760
          %646 = vmatprep.subr.mxu0 %v645
          %v647 = vand.u32 %v268, 4294901760
          %v648 = vsub.f32 %v268, %v647
          %v649 = vand.u32 %v648, 4294901760
          %v650 = vsub.f32 %v648, %v649
          %v651 = vand.u32 %v650, 4294901760
          %652 = vmatpush1.msra.mxu0 %v651
          %v653 = vand.u32 %v271, 4294901760
          %v654 = vsub.f32 %v271, %v653
          %v655 = vand.u32 %v654, 4294901760
          %v656 = vsub.f32 %v654, %v655
          %v657 = vand.u32 %v656, 4294901760
          %658 = vmatprep.subr.mxu0 %v657
          %v659 = vand.u32 %v270, 4294901760
          %v660 = vsub.f32 %v270, %v659
          %v661 = vand.u32 %v660, 4294901760
          %v662 = vsub.f32 %v660, %v661
          %v663 = vand.u32 %v662, 4294901760
          %664 = vmatpush1.msra.mxu0 %v663
          %v665 = vand.u32 %v273, 4294901760
          %v666 = vsub.f32 %v273, %v665
          %v667 = vand.u32 %v666, 4294901760
          %v668 = vsub.f32 %v666, %v667
          %v669 = vand.u32 %v668, 4294901760
          %670 = vmatprep.subr.mxu0 %v669
          %v671 = vand.u32 %v272, 4294901760
          %v672 = vsub.f32 %v272, %v671
          %v673 = vand.u32 %v672, 4294901760
          %v674 = vsub.f32 %v672, %v673
          %v675 = vand.u32 %v674, 4294901760
          %676 = vmatpush1.msra.mxu0 %v675
          %v677 = vand.u32 %v275, 4294901760
          %v678 = vsub.f32 %v275, %v677
          %v679 = vand.u32 %v678, 4294901760
          %v680 = vsub.f32 %v678, %v679
          %v681 = vand.u32 %v680, 4294901760
          %682 = vmatprep.subr.mxu0 %v681
          %v683 = vand.u32 %v274, 4294901760
          %v684 = vsub.f32 %v274, %v683
          %v685 = vand.u32 %v684, 4294901760
          %v686 = vsub.f32 %v684, %v685
          %v687 = vand.u32 %v686, 4294901760
          %688 = vmatpush1.msra.mxu0 %v687
          %v689 = vand.u32 %v277, 4294901760
          %v690 = vsub.f32 %v277, %v689
          %v691 = vand.u32 %v690, 4294901760
          %v692 = vsub.f32 %v690, %v691
          %v693 = vand.u32 %v692, 4294901760
          %694 = vmatprep.subr.mxu0 %v693
          %v695 = vand.u32 %v276, 4294901760
          %v696 = vsub.f32 %v276, %v695
          %v697 = vand.u32 %v696, 4294901760
          %v698 = vsub.f32 %v696, %v697
          %v699 = vand.u32 %v698, 4294901760
          %700 = vmatpush1.msra.mxu0 %v699
          %v701 = vand.u32 %v279, 4294901760
          %v702 = vsub.f32 %v279, %v701
          %v703 = vand.u32 %v702, 4294901760
          %v704 = vsub.f32 %v702, %v703
          %v705 = vand.u32 %v704, 4294901760
          %706 = vmatprep.subr.mxu0 %v705
          %v707 = vand.u32 %v278, 4294901760
          %v708 = vsub.f32 %v278, %v707
          %v709 = vand.u32 %v708, 4294901760
          %v710 = vsub.f32 %v708, %v709
          %v711 = vand.u32 %v710, 4294901760
          %712 = vmatpush1.msra.mxu0 %v711
          %v713 = vand.u32 %v281, 4294901760
          %v714 = vsub.f32 %v281, %v713
          %v715 = vand.u32 %v714, 4294901760
          %v716 = vsub.f32 %v714, %v715
          %v717 = vand.u32 %v716, 4294901760
          %718 = vmatprep.subr.mxu0 %v717
          %v719 = vand.u32 %v280, 4294901760
          %v720 = vsub.f32 %v280, %v719
          %v721 = vand.u32 %v720, 4294901760
          %v722 = vsub.f32 %v720, %v721
          %v723 = vand.u32 %v722, 4294901760
          %724 = vmatpush1.msra.mxu0 %v723
          %v725 = vand.u32 %v283, 4294901760
          %v726 = vsub.f32 %v283, %v725
          %v727 = vand.u32 %v726, 4294901760
          %v728 = vsub.f32 %v726, %v727
          %v729 = vand.u32 %v728, 4294901760
          %730 = vmatprep.subr.mxu0 %v729
          %v731 = vand.u32 %v282, 4294901760
          %v732 = vsub.f32 %v282, %v731
          %v733 = vand.u32 %v732, 4294901760
          %v734 = vsub.f32 %v732, %v733
          %v735 = vand.u32 %v734, 4294901760
          %736 = vmatpush1.msra.mxu0 %v735
          %v737 = vand.u32 %v285, 4294901760
          %v738 = vsub.f32 %v285, %v737
          %v739 = vand.u32 %v738, 4294901760
          %v740 = vsub.f32 %v738, %v739
          %v741 = vand.u32 %v740, 4294901760
          %742 = vmatprep.subr.mxu0 %v741
          %v743 = vand.u32 %v284, 4294901760
          %v744 = vsub.f32 %v284, %v743
          %v745 = vand.u32 %v744, 4294901760
          %v746 = vsub.f32 %v744, %v745
          %v747 = vand.u32 %v746, 4294901760
          %748 = vmatpush1.msra.mxu0 %v747
          %v749 = vand.u32 %v287, 4294901760
          %v750 = vsub.f32 %v287, %v749
          %v751 = vand.u32 %v750, 4294901760
          %v752 = vsub.f32 %v750, %v751
          %v753 = vand.u32 %v752, 4294901760
          %754 = vmatprep.subr.mxu0 %v753
          %v755 = vand.u32 %v286, 4294901760
          %v756 = vsub.f32 %v286, %v755
          %v757 = vand.u32 %v756, 4294901760
          %v758 = vsub.f32 %v756, %v757
          %v759 = vand.u32 %v758, 4294901760
          %760 = vmatpush1.msra.mxu0 %v759
          %v761 = vand.u32 %v289, 4294901760
          %v762 = vsub.f32 %v289, %v761
          %v763 = vand.u32 %v762, 4294901760
          %v764 = vsub.f32 %v762, %v763
          %v765 = vand.u32 %v764, 4294901760
          %766 = vmatprep.subr.mxu0 %v765
          %v767 = vand.u32 %v288, 4294901760
          %v768 = vsub.f32 %v288, %v767
          %v769 = vand.u32 %v768, 4294901760
          %v770 = vsub.f32 %v768, %v769
          %v771 = vand.u32 %v770, 4294901760
          %772 = vmatpush1.msra.mxu0 %v771
          %v773 = vand.u32 %v291, 4294901760
          %v774 = vsub.f32 %v291, %v773
          %v775 = vand.u32 %v774, 4294901760
          %v776 = vsub.f32 %v774, %v775
          %v777 = vand.u32 %v776, 4294901760
          %778 = vmatprep.subr.mxu0 %v777
          %v779 = vand.u32 %v290, 4294901760
          %v780 = vsub.f32 %v290, %v779
          %v781 = vand.u32 %v780, 4294901760
          %v782 = vsub.f32 %v780, %v781
          %v783 = vand.u32 %v782, 4294901760
          %784 = vmatpush1.msra.mxu0 %v783
          %v785 = vand.u32 %v293, 4294901760
          %v786 = vsub.f32 %v293, %v785
          %v787 = vand.u32 %v786, 4294901760
          %v788 = vsub.f32 %v786, %v787
          %v789 = vand.u32 %v788, 4294901760
          %790 = vmatprep.subr.mxu0 %v789
          %v791 = vand.u32 %v292, 4294901760
          %v792 = vsub.f32 %v292, %v791
          %v793 = vand.u32 %v792, 4294901760
          %v794 = vsub.f32 %v792, %v793
          %v795 = vand.u32 %v794, 4294901760
          %796 = vmatpush1.msra.mxu0 %v795
          %v797 = vand.u32 %v295, 4294901760
          %v798 = vsub.f32 %v295, %v797
          %v799 = vand.u32 %v798, 4294901760
          %v800 = vsub.f32 %v798, %v799
          %v801 = vand.u32 %v800, 4294901760
          %802 = vmatprep.subr.mxu0 %v801
          %v803 = vand.u32 %v294, 4294901760
          %v804 = vsub.f32 %v294, %v803
          %v805 = vand.u32 %v804, 4294901760
          %v806 = vsub.f32 %v804, %v805
          %v807 = vand.u32 %v806, 4294901760
          %808 = vmatpush1.msra.mxu0 %v807
          %v809 = vand.u32 %v297, 4294901760
          %v810 = vsub.f32 %v297, %v809
          %v811 = vand.u32 %v810, 4294901760
          %v812 = vsub.f32 %v810, %v811
          %v813 = vand.u32 %v812, 4294901760
          %814 = vmatprep.subr.mxu0 %v813
          %v815 = vand.u32 %v296, 4294901760
          %v816 = vsub.f32 %v296, %v815
          %v817 = vand.u32 %v816, 4294901760
          %v818 = vsub.f32 %v816, %v817
          %v819 = vand.u32 %v818, 4294901760
          %820 = vmatpush1.msra.mxu0 %v819
          %v821 = vand.u32 %v299, 4294901760
          %v822 = vsub.f32 %v299, %v821
          %v823 = vand.u32 %v822, 4294901760
          %v824 = vsub.f32 %v822, %v823
          %v825 = vand.u32 %v824, 4294901760
          %826 = vmatprep.subr.mxu0 %v825
          %v827 = vand.u32 %v298, 4294901760
          %v828 = vsub.f32 %v298, %v827
          %v829 = vand.u32 %v828, 4294901760
          %v830 = vsub.f32 %v828, %v829
          %v831 = vand.u32 %v830, 4294901760
          %832 = vmatpush1.msra.mxu0 %v831
          %v833 = vand.u32 %v301, 4294901760
          %v834 = vsub.f32 %v301, %v833
          %v835 = vand.u32 %v834, 4294901760
          %v836 = vsub.f32 %v834, %v835
          %v837 = vand.u32 %v836, 4294901760
          %838 = vmatprep.subr.mxu0 %v837
          %v839 = vand.u32 %v300, 4294901760
          %v840 = vsub.f32 %v300, %v839
          %v841 = vand.u32 %v840, 4294901760
          %v842 = vsub.f32 %v840, %v841
          %v843 = vand.u32 %v842, 4294901760
          %844 = vmatpush1.msra.mxu0 %v843
          %v845 = vand.u32 %v303, 4294901760
          %v846 = vsub.f32 %v303, %v845
          %v847 = vand.u32 %v846, 4294901760
          %v848 = vsub.f32 %v846, %v847
          %v849 = vand.u32 %v848, 4294901760
          %850 = vmatprep.subr.mxu0 %v849
          %v851 = vand.u32 %v302, 4294901760
          %v852 = vsub.f32 %v302, %v851
          %v853 = vand.u32 %v852, 4294901760
          %v854 = vsub.f32 %v852, %v853
          %v855 = vand.u32 %v854, 4294901760
          %856 = vmatpush1.msra.mxu0 %v855
          %v857 = vand.u32 %v305, 4294901760
          %v858 = vsub.f32 %v305, %v857
          %v859 = vand.u32 %v858, 4294901760
          %v860 = vsub.f32 %v858, %v859
          %v861 = vand.u32 %v860, 4294901760
          %862 = vmatprep.subr.mxu0 %v861
          %v863 = vand.u32 %v304, 4294901760
          %v864 = vsub.f32 %v304, %v863
          %v865 = vand.u32 %v864, 4294901760
          %v866 = vsub.f32 %v864, %v865
          %v867 = vand.u32 %v866, 4294901760
          %868 = vmatpush1.msra.mxu0 %v867
          %v869 = vand.u32 %v307, 4294901760
          %v870 = vsub.f32 %v307, %v869
          %v871 = vand.u32 %v870, 4294901760
          %v872 = vsub.f32 %v870, %v871
          %v873 = vand.u32 %v872, 4294901760
          %874 = vmatprep.subr.mxu0 %v873
          %v875 = vand.u32 %v306, 4294901760
          %v876 = vsub.f32 %v306, %v875
          %v877 = vand.u32 %v876, 4294901760
          %v878 = vsub.f32 %v876, %v877
          %v879 = vand.u32 %v878, 4294901760
          %880 = vmatpush1.msra.mxu0 %v879
          %v881 = vand.u32 %v309, 4294901760
          %v882 = vsub.f32 %v309, %v881
          %v883 = vand.u32 %v882, 4294901760
          %v884 = vsub.f32 %v882, %v883
          %v885 = vand.u32 %v884, 4294901760
          %886 = vmatprep.subr.mxu0 %v885
          %v887 = vand.u32 %v308, 4294901760
          %v888 = vsub.f32 %v308, %v887
          %v889 = vand.u32 %v888, 4294901760
          %v890 = vsub.f32 %v888, %v889
          %v891 = vand.u32 %v890, 4294901760
          %892 = vmatpush1.msra.mxu0 %v891
          %v893 = vand.u32 %v311, 4294901760
          %v894 = vsub.f32 %v311, %v893
          %v895 = vand.u32 %v894, 4294901760
          %v896 = vsub.f32 %v894, %v895
          %v897 = vand.u32 %v896, 4294901760
          %898 = vmatprep.subr.mxu0 %v897
          %v899 = vand.u32 %v310, 4294901760
          %v900 = vsub.f32 %v310, %v899
          %v901 = vand.u32 %v900, 4294901760
          %v902 = vsub.f32 %v900, %v901
          %v903 = vand.u32 %v902, 4294901760
          %904 = vmatpush1.msra.mxu0 %v903
          %v905 = vand.u32 %v233, 4294901760
          %906 = vmatprep.mubr.f32.mxu0 %v905
          %v907 = vand.u32 %v232, 4294901760
          %908 = vmatmul.mubr.f32.gmra.mrb[0].mxu0 %v907
          %v909 = vpop.f32.mrb[0].mxu0
          %v910 = vadd.f32 %v517, %v909
          %v911 = vpop.f32.mrb[0].mxu0
          %v912 = vadd.f32 %v519, %v911
          %913 = vdwg.mxu0
          %v914 = vand.u32 %v249, 4294901760
          %v915 = vsub.f32 %v249, %v914
          %916 = vmatprep.subr.mxu0 %v915
          %v917 = vand.u32 %v248, 4294901760
          %v918 = vsub.f32 %v248, %v917
          %919 = vmatpush1.msra.mxu0 %v918
          %v920 = vand.u32 %v251, 4294901760
          %v921 = vsub.f32 %v251, %v920
          %922 = vmatprep.subr.mxu0 %v921
          %v923 = vand.u32 %v250, 4294901760
          %v924 = vsub.f32 %v250, %v923
          %925 = vmatpush1.msra.mxu0 %v924
          %v926 = vand.u32 %v253, 4294901760
          %v927 = vsub.f32 %v253, %v926
          %928 = vmatprep.subr.mxu0 %v927
          %v929 = vand.u32 %v252, 4294901760
          %v930 = vsub.f32 %v252, %v929
          %931 = vmatpush1.msra.mxu0 %v930
          %v932 = vand.u32 %v255, 4294901760
          %v933 = vsub.f32 %v255, %v932
          %934 = vmatprep.subr.mxu0 %v933
          %v935 = vand.u32 %v254, 4294901760
          %v936 = vsub.f32 %v254, %v935
          %937 = vmatpush1.msra.mxu0 %v936
          %v938 = vand.u32 %v257, 4294901760
          %v939 = vsub.f32 %v257, %v938
          %940 = vmatprep.subr.mxu0 %v939
          %v941 = vand.u32 %v256, 4294901760
          %v942 = vsub.f32 %v256, %v941
          %943 = vmatpush1.msra.mxu0 %v942
          %v944 = vand.u32 %v259, 4294901760
          %v945 = vsub.f32 %v259, %v944
          %946 = vmatprep.subr.mxu0 %v945
          %v947 = vand.u32 %v258, 4294901760
          %v948 = vsub.f32 %v258, %v947
          %949 = vmatpush1.msra.mxu0 %v948
          %v950 = vand.u32 %v261, 4294901760
          %v951 = vsub.f32 %v261, %v950
          %952 = vmatprep.subr.mxu0 %v951
          %v953 = vand.u32 %v260, 4294901760
          %v954 = vsub.f32 %v260, %v953
          %955 = vmatpush1.msra.mxu0 %v954
          %v956 = vand.u32 %v263, 4294901760
          %v957 = vsub.f32 %v263, %v956
          %958 = vmatprep.subr.mxu0 %v957
          %v959 = vand.u32 %v262, 4294901760
          %v960 = vsub.f32 %v262, %v959
          %961 = vmatpush1.msra.mxu0 %v960
          %v962 = vand.u32 %v265, 4294901760
          %v963 = vsub.f32 %v265, %v962
          %964 = vmatprep.subr.mxu0 %v963
          %v965 = vand.u32 %v264, 4294901760
          %v966 = vsub.f32 %v264, %v965
          %967 = vmatpush1.msra.mxu0 %v966
          %v968 = vand.u32 %v267, 4294901760
          %v969 = vsub.f32 %v267, %v968
          %970 = vmatprep.subr.mxu0 %v969
          %v971 = vand.u32 %v266, 4294901760
          %v972 = vsub.f32 %v266, %v971
          %973 = vmatpush1.msra.mxu0 %v972
          %v974 = vand.u32 %v269, 4294901760
          %v975 = vsub.f32 %v269, %v974
          %976 = vmatprep.subr.mxu0 %v975
          %v977 = vand.u32 %v268, 4294901760
          %v978 = vsub.f32 %v268, %v977
          %979 = vmatpush1.msra.mxu0 %v978
          %v980 = vand.u32 %v271, 4294901760
          %v981 = vsub.f32 %v271, %v980
          %982 = vmatprep.subr.mxu0 %v981
          %v983 = vand.u32 %v270, 4294901760
          %v984 = vsub.f32 %v270, %v983
          %985 = vmatpush1.msra.mxu0 %v984
          %v986 = vand.u32 %v273, 4294901760
          %v987 = vsub.f32 %v273, %v986
          %988 = vmatprep.subr.mxu0 %v987
          %v989 = vand.u32 %v272, 4294901760
          %v990 = vsub.f32 %v272, %v989
          %991 = vmatpush1.msra.mxu0 %v990
          %v992 = vand.u32 %v275, 4294901760
          %v993 = vsub.f32 %v275, %v992
          %994 = vmatprep.subr.mxu0 %v993
          %v995 = vand.u32 %v274, 4294901760
          %v996 = vsub.f32 %v274, %v995
          %997 = vmatpush1.msra.mxu0 %v996
          %v998 = vand.u32 %v277, 4294901760
          %v999 = vsub.f32 %v277, %v998
          %1000 = vmatprep.subr.mxu0 %v999
          %v1001 = vand.u32 %v276, 4294901760
          %v1002 = vsub.f32 %v276, %v1001
          %1003 = vmatpush1.msra.mxu0 %v1002
          %v1004 = vand.u32 %v279, 4294901760
          %v1005 = vsub.f32 %v279, %v1004
          %1006 = vmatprep.subr.mxu0 %v1005
          %v1007 = vand.u32 %v278, 4294901760
          %v1008 = vsub.f32 %v278, %v1007
          %1009 = vmatpush1.msra.mxu0 %v1008
          %v1010 = vand.u32 %v281, 4294901760
          %v1011 = vsub.f32 %v281, %v1010
          %1012 = vmatprep.subr.mxu0 %v1011
          %v1013 = vand.u32 %v280, 4294901760
          %v1014 = vsub.f32 %v280, %v1013
          %1015 = vmatpush1.msra.mxu0 %v1014
          %v1016 = vand.u32 %v283, 4294901760
          %v1017 = vsub.f32 %v283, %v1016
          %1018 = vmatprep.subr.mxu0 %v1017
          %v1019 = vand.u32 %v282, 4294901760
          %v1020 = vsub.f32 %v282, %v1019
          %1021 = vmatpush1.msra.mxu0 %v1020
          %v1022 = vand.u32 %v285, 4294901760
          %v1023 = vsub.f32 %v285, %v1022
          %1024 = vmatprep.subr.mxu0 %v1023
          %v1025 = vand.u32 %v284, 4294901760
          %v1026 = vsub.f32 %v284, %v1025
          %1027 = vmatpush1.msra.mxu0 %v1026
          %v1028 = vand.u32 %v287, 4294901760
          %v1029 = vsub.f32 %v287, %v1028
          %1030 = vmatprep.subr.mxu0 %v1029
          %v1031 = vand.u32 %v286, 4294901760
          %v1032 = vsub.f32 %v286, %v1031
          %1033 = vmatpush1.msra.mxu0 %v1032
          %v1034 = vand.u32 %v289, 4294901760
          %v1035 = vsub.f32 %v289, %v1034
          %1036 = vmatprep.subr.mxu0 %v1035
          %v1037 = vand.u32 %v288, 4294901760
          %v1038 = vsub.f32 %v288, %v1037
          %1039 = vmatpush1.msra.mxu0 %v1038
          %v1040 = vand.u32 %v291, 4294901760
          %v1041 = vsub.f32 %v291, %v1040
          %1042 = vmatprep.subr.mxu0 %v1041
          %v1043 = vand.u32 %v290, 4294901760
          %v1044 = vsub.f32 %v290, %v1043
          %1045 = vmatpush1.msra.mxu0 %v1044
          %v1046 = vand.u32 %v293, 4294901760
          %v1047 = vsub.f32 %v293, %v1046
          %1048 = vmatprep.subr.mxu0 %v1047
          %v1049 = vand.u32 %v292, 4294901760
          %v1050 = vsub.f32 %v292, %v1049
          %1051 = vmatpush1.msra.mxu0 %v1050
          %v1052 = vand.u32 %v295, 4294901760
          %v1053 = vsub.f32 %v295, %v1052
          %1054 = vmatprep.subr.mxu0 %v1053
          %v1055 = vand.u32 %v294, 4294901760
          %v1056 = vsub.f32 %v294, %v1055
          %1057 = vmatpush1.msra.mxu0 %v1056
          %v1058 = vand.u32 %v297, 4294901760
          %v1059 = vsub.f32 %v297, %v1058
          %1060 = vmatprep.subr.mxu0 %v1059
          %v1061 = vand.u32 %v296, 4294901760
          %v1062 = vsub.f32 %v296, %v1061
          %1063 = vmatpush1.msra.mxu0 %v1062
          %v1064 = vand.u32 %v299, 4294901760
          %v1065 = vsub.f32 %v299, %v1064
          %1066 = vmatprep.subr.mxu0 %v1065
          %v1067 = vand.u32 %v298, 4294901760
          %v1068 = vsub.f32 %v298, %v1067
          %1069 = vmatpush1.msra.mxu0 %v1068
          %v1070 = vand.u32 %v301, 4294901760
          %v1071 = vsub.f32 %v301, %v1070
          %1072 = vmatprep.subr.mxu0 %v1071
          %v1073 = vand.u32 %v300, 4294901760
          %v1074 = vsub.f32 %v300, %v1073
          %1075 = vmatpush1.msra.mxu0 %v1074
          %v1076 = vand.u32 %v303, 4294901760
          %v1077 = vsub.f32 %v303, %v1076
          %1078 = vmatprep.subr.mxu0 %v1077
          %v1079 = vand.u32 %v302, 4294901760
          %v1080 = vsub.f32 %v302, %v1079
          %1081 = vmatpush1.msra.mxu0 %v1080
          %v1082 = vand.u32 %v305, 4294901760
          %v1083 = vsub.f32 %v305, %v1082
          %1084 = vmatprep.subr.mxu0 %v1083
          %v1085 = vand.u32 %v304, 4294901760
          %v1086 = vsub.f32 %v304, %v1085
          %1087 = vmatpush1.msra.mxu0 %v1086
          %v1088 = vand.u32 %v307, 4294901760
          %v1089 = vsub.f32 %v307, %v1088
          %1090 = vmatprep.subr.mxu0 %v1089
          %v1091 = vand.u32 %v306, 4294901760
          %v1092 = vsub.f32 %v306, %v1091
          %1093 = vmatpush1.msra.mxu0 %v1092
          %v1094 = vand.u32 %v309, 4294901760
          %v1095 = vsub.f32 %v309, %v1094
          %1096 = vmatprep.subr.mxu0 %v1095
          %v1097 = vand.u32 %v308, 4294901760
          %v1098 = vsub.f32 %v308, %v1097
          %1099 = vmatpush1.msra.mxu0 %v1098
          %v1100 = vand.u32 %v311, 4294901760
          %v1101 = vsub.f32 %v311, %v1100
          %1102 = vmatprep.subr.mxu0 %v1101
          %v1103 = vand.u32 %v310, 4294901760
          %v1104 = vsub.f32 %v310, %v1103
          %1105 = vmatpush1.msra.mxu0 %v1104
          %v1106 = vand.u32 %v233, 4294901760
          %v1107 = vsub.f32 %v233, %v1106
          %1108 = vmatprep.mubr.f32.mxu0 %v1107
          %v1109 = vand.u32 %v232, 4294901760
          %v1110 = vsub.f32 %v232, %v1109
          %1111 = vmatmul.mubr.f32.gmra.mrb[0].mxu0 %v1110
          %v1112 = vpop.f32.mrb[0].mxu0
          %v1113 = vadd.f32 %v910, %v1112
          %v1114 = vpop.f32.mrb[0].mxu0
          %v1115 = vadd.f32 %v912, %v1114
          %1116 = vdwg.mxu0
          %v1117 = vand.u32 %v249, 4294901760
          %1118 = vmatprep.subr.mxu0 %v1117
          %v1119 = vand.u32 %v248, 4294901760
          %1120 = vmatpush1.msra.mxu0 %v1119
          %v1121 = vand.u32 %v251, 4294901760
          %1122 = vmatprep.subr.mxu0 %v1121
          %v1123 = vand.u32 %v250, 4294901760
          %1124 = vmatpush1.msra.mxu0 %v1123
          %v1125 = vand.u32 %v253, 4294901760
          %1126 = vmatprep.subr.mxu0 %v1125
          %v1127 = vand.u32 %v252, 4294901760
          %1128 = vmatpush1.msra.mxu0 %v1127
          %v1129 = vand.u32 %v255, 4294901760
          %1130 = vmatprep.subr.mxu0 %v1129
          %v1131 = vand.u32 %v254, 4294901760
          %1132 = vmatpush1.msra.mxu0 %v1131
          %v1133 = vand.u32 %v257, 4294901760
          %1134 = vmatprep.subr.mxu0 %v1133
          %v1135 = vand.u32 %v256, 4294901760
          %1136 = vmatpush1.msra.mxu0 %v1135
          %v1137 = vand.u32 %v259, 4294901760
          %1138 = vmatprep.subr.mxu0 %v1137
          %v1139 = vand.u32 %v258, 4294901760
          %1140 = vmatpush1.msra.mxu0 %v1139
          %v1141 = vand.u32 %v261, 4294901760
          %1142 = vmatprep.subr.mxu0 %v1141
          %v1143 = vand.u32 %v260, 4294901760
          %1144 = vmatpush1.msra.mxu0 %v1143
          %v1145 = vand.u32 %v263, 4294901760
          %1146 = vmatprep.subr.mxu0 %v1145
          %v1147 = vand.u32 %v262, 4294901760
          %1148 = vmatpush1.msra.mxu0 %v1147
          %v1149 = vand.u32 %v265, 4294901760
          %1150 = vmatprep.subr.mxu0 %v1149
          %v1151 = vand.u32 %v264, 4294901760
          %1152 = vmatpush1.msra.mxu0 %v1151
          %v1153 = vand.u32 %v267, 4294901760
          %1154 = vmatprep.subr.mxu0 %v1153
          %v1155 = vand.u32 %v266, 4294901760
          %1156 = vmatpush1.msra.mxu0 %v1155
          %v1157 = vand.u32 %v269, 4294901760
          %1158 = vmatprep.subr.mxu0 %v1157
          %v1159 = vand.u32 %v268, 4294901760
          %1160 = vmatpush1.msra.mxu0 %v1159
          %v1161 = vand.u32 %v271, 4294901760
          %1162 = vmatprep.subr.mxu0 %v1161
          %v1163 = vand.u32 %v270, 4294901760
          %1164 = vmatpush1.msra.mxu0 %v1163
          %v1165 = vand.u32 %v273, 4294901760
          %1166 = vmatprep.subr.mxu0 %v1165
          %v1167 = vand.u32 %v272, 4294901760
          %1168 = vmatpush1.msra.mxu0 %v1167
          %v1169 = vand.u32 %v275, 4294901760
          %1170 = vmatprep.subr.mxu0 %v1169
          %v1171 = vand.u32 %v274, 4294901760
          %1172 = vmatpush1.msra.mxu0 %v1171
          %v1173 = vand.u32 %v277, 4294901760
          %1174 = vmatprep.subr.mxu0 %v1173
          %v1175 = vand.u32 %v276, 4294901760
          %1176 = vmatpush1.msra.mxu0 %v1175
          %v1177 = vand.u32 %v279, 4294901760
          %1178 = vmatprep.subr.mxu0 %v1177
          %v1179 = vand.u32 %v278, 4294901760
          %1180 = vmatpush1.msra.mxu0 %v1179
          %v1181 = vand.u32 %v281, 4294901760
          %1182 = vmatprep.subr.mxu0 %v1181
          %v1183 = vand.u32 %v280, 4294901760
          %1184 = vmatpush1.msra.mxu0 %v1183
          %v1185 = vand.u32 %v283, 4294901760
          %1186 = vmatprep.subr.mxu0 %v1185
          %v1187 = vand.u32 %v282, 4294901760
          %1188 = vmatpush1.msra.mxu0 %v1187
          %v1189 = vand.u32 %v285, 4294901760
          %1190 = vmatprep.subr.mxu0 %v1189
          %v1191 = vand.u32 %v284, 4294901760
          %1192 = vmatpush1.msra.mxu0 %v1191
          %v1193 = vand.u32 %v287, 4294901760
          %1194 = vmatprep.subr.mxu0 %v1193
          %v1195 = vand.u32 %v286, 4294901760
          %1196 = vmatpush1.msra.mxu0 %v1195
          %v1197 = vand.u32 %v289, 4294901760
          %1198 = vmatprep.subr.mxu0 %v1197
          %v1199 = vand.u32 %v288, 4294901760
          %1200 = vmatpush1.msra.mxu0 %v1199
          %v1201 = vand.u32 %v291, 4294901760
          %1202 = vmatprep.subr.mxu0 %v1201
          %v1203 = vand.u32 %v290, 4294901760
          %1204 = vmatpush1.msra.mxu0 %v1203
          %v1205 = vand.u32 %v293, 4294901760
          %1206 = vmatprep.subr.mxu0 %v1205
          %v1207 = vand.u32 %v292, 4294901760
          %1208 = vmatpush1.msra.mxu0 %v1207
          %v1209 = vand.u32 %v295, 4294901760
          %1210 = vmatprep.subr.mxu0 %v1209
          %v1211 = vand.u32 %v294, 4294901760
          %1212 = vmatpush1.msra.mxu0 %v1211
          %v1213 = vand.u32 %v297, 4294901760
          %1214 = vmatprep.subr.mxu0 %v1213
          %v1215 = vand.u32 %v296, 4294901760
          %1216 = vmatpush1.msra.mxu0 %v1215
          %v1217 = vand.u32 %v299, 4294901760
          %1218 = vmatprep.subr.mxu0 %v1217
          %v1219 = vand.u32 %v298, 4294901760
          %1220 = vmatpush1.msra.mxu0 %v1219
          %v1221 = vand.u32 %v301, 4294901760
          %1222 = vmatprep.subr.mxu0 %v1221
          %v1223 = vand.u32 %v300, 4294901760
          %1224 = vmatpush1.msra.mxu0 %v1223
          %v1225 = vand.u32 %v303, 4294901760
          %1226 = vmatprep.subr.mxu0 %v1225
          %v1227 = vand.u32 %v302, 4294901760
          %1228 = vmatpush1.msra.mxu0 %v1227
          %v1229 = vand.u32 %v305, 4294901760
          %1230 = vmatprep.subr.mxu0 %v1229
          %v1231 = vand.u32 %v304, 4294901760
          %1232 = vmatpush1.msra.mxu0 %v1231
          %v1233 = vand.u32 %v307, 4294901760
          %1234 = vmatprep.subr.mxu0 %v1233
          %v1235 = vand.u32 %v306, 4294901760
          %1236 = vmatpush1.msra.mxu0 %v1235
          %v1237 = vand.u32 %v309, 4294901760
          %1238 = vmatprep.subr.mxu0 %v1237
          %v1239 = vand.u32 %v308, 4294901760
          %1240 = vmatpush1.msra.mxu0 %v1239
          %v1241 = vand.u32 %v311, 4294901760
          %1242 = vmatprep.subr.mxu0 %v1241
          %v1243 = vand.u32 %v310, 4294901760
          %1244 = vmatpush1.msra.mxu0 %v1243
          %v1245 = vand.u32 %v233, 4294901760
          %v1246 = vsub.f32 %v233, %v1245
          %v1247 = vand.u32 %v1246, 4294901760
          %1248 = vmatprep.mubr.f32.mxu0 %v1247
          %v1249 = vand.u32 %v232, 4294901760
          %v1250 = vsub.f32 %v232, %v1249
          %v1251 = vand.u32 %v1250, 4294901760
          %1252 = vmatmul.mubr.f32.gmra.mrb[0].mxu0 %v1251
          %v1253 = vpop.f32.mrb[0].mxu0
          %v1254 = vadd.f32 %v1113, %v1253
          %v1255 = vpop.f32.mrb[0].mxu0
          %v1256 = vadd.f32 %v1115, %v1255
          %1257 = vdwg.mxu0
          %v1258 = vand.u32 %v249, 4294901760
          %v1259 = vsub.f32 %v249, %v1258
          %v1260 = vand.u32 %v1259, 4294901760
          %1261 = vmatprep.subr.mxu0 %v1260
          %v1262 = vand.u32 %v248, 4294901760
          %v1263 = vsub.f32 %v248, %v1262
          %v1264 = vand.u32 %v1263, 4294901760
          %1265 = vmatpush1.msra.mxu0 %v1264
          %v1266 = vand.u32 %v251, 4294901760
          %v1267 = vsub.f32 %v251, %v1266
          %v1268 = vand.u32 %v1267, 4294901760
          %1269 = vmatprep.subr.mxu0 %v1268
          %v1270 = vand.u32 %v250, 4294901760
          %v1271 = vsub.f32 %v250, %v1270
          %v1272 = vand.u32 %v1271, 4294901760
          %1273 = vmatpush1.msra.mxu0 %v1272
          %v1274 = vand.u32 %v253, 4294901760
          %v1275 = vsub.f32 %v253, %v1274
          %v1276 = vand.u32 %v1275, 4294901760
          %1277 = vmatprep.subr.mxu0 %v1276
          %v1278 = vand.u32 %v252, 4294901760
          %v1279 = vsub.f32 %v252, %v1278
          %v1280 = vand.u32 %v1279, 4294901760
          %1281 = vmatpush1.msra.mxu0 %v1280
          %v1282 = vand.u32 %v255, 4294901760
          %v1283 = vsub.f32 %v255, %v1282
          %v1284 = vand.u32 %v1283, 4294901760
          %1285 = vmatprep.subr.mxu0 %v1284
          %v1286 = vand.u32 %v254, 4294901760
          %v1287 = vsub.f32 %v254, %v1286
          %v1288 = vand.u32 %v1287, 4294901760
          %1289 = vmatpush1.msra.mxu0 %v1288
          %v1290 = vand.u32 %v257, 4294901760
          %v1291 = vsub.f32 %v257, %v1290
          %v1292 = vand.u32 %v1291, 4294901760
          %1293 = vmatprep.subr.mxu0 %v1292
          %v1294 = vand.u32 %v256, 4294901760
          %v1295 = vsub.f32 %v256, %v1294
          %v1296 = vand.u32 %v1295, 4294901760
          %1297 = vmatpush1.msra.mxu0 %v1296
          %v1298 = vand.u32 %v259, 4294901760
          %v1299 = vsub.f32 %v259, %v1298
          %v1300 = vand.u32 %v1299, 4294901760
          %1301 = vmatprep.subr.mxu0 %v1300
          %v1302 = vand.u32 %v258, 4294901760
          %v1303 = vsub.f32 %v258, %v1302
          %v1304 = vand.u32 %v1303, 4294901760
          %1305 = vmatpush1.msra.mxu0 %v1304
          %v1306 = vand.u32 %v261, 4294901760
          %v1307 = vsub.f32 %v261, %v1306
          %v1308 = vand.u32 %v1307, 4294901760
          %1309 = vmatprep.subr.mxu0 %v1308
          %v1310 = vand.u32 %v260, 4294901760
          %v1311 = vsub.f32 %v260, %v1310
          %v1312 = vand.u32 %v1311, 4294901760
          %1313 = vmatpush1.msra.mxu0 %v1312
          %v1314 = vand.u32 %v263, 4294901760
          %v1315 = vsub.f32 %v263, %v1314
          %v1316 = vand.u32 %v1315, 4294901760
          %1317 = vmatprep.subr.mxu0 %v1316
          %v1318 = vand.u32 %v262, 4294901760
          %v1319 = vsub.f32 %v262, %v1318
          %v1320 = vand.u32 %v1319, 4294901760
          %1321 = vmatpush1.msra.mxu0 %v1320
          %v1322 = vand.u32 %v265, 4294901760
          %v1323 = vsub.f32 %v265, %v1322
          %v1324 = vand.u32 %v1323, 4294901760
          %1325 = vmatprep.subr.mxu0 %v1324
          %v1326 = vand.u32 %v264, 4294901760
          %v1327 = vsub.f32 %v264, %v1326
          %v1328 = vand.u32 %v1327, 4294901760
          %1329 = vmatpush1.msra.mxu0 %v1328
          %v1330 = vand.u32 %v267, 4294901760
          %v1331 = vsub.f32 %v267, %v1330
          %v1332 = vand.u32 %v1331, 4294901760
          %1333 = vmatprep.subr.mxu0 %v1332
          %v1334 = vand.u32 %v266, 4294901760
          %v1335 = vsub.f32 %v266, %v1334
          %v1336 = vand.u32 %v1335, 4294901760
          %1337 = vmatpush1.msra.mxu0 %v1336
          %v1338 = vand.u32 %v269, 4294901760
          %v1339 = vsub.f32 %v269, %v1338
          %v1340 = vand.u32 %v1339, 4294901760
          %1341 = vmatprep.subr.mxu0 %v1340
          %v1342 = vand.u32 %v268, 4294901760
          %v1343 = vsub.f32 %v268, %v1342
          %v1344 = vand.u32 %v1343, 4294901760
          %1345 = vmatpush1.msra.mxu0 %v1344
          %v1346 = vand.u32 %v271, 4294901760
          %v1347 = vsub.f32 %v271, %v1346
          %v1348 = vand.u32 %v1347, 4294901760
          %1349 = vmatprep.subr.mxu0 %v1348
          %v1350 = vand.u32 %v270, 4294901760
          %v1351 = vsub.f32 %v270, %v1350
          %v1352 = vand.u32 %v1351, 4294901760
          %1353 = vmatpush1.msra.mxu0 %v1352
          %v1354 = vand.u32 %v273, 4294901760
          %v1355 = vsub.f32 %v273, %v1354
          %v1356 = vand.u32 %v1355, 4294901760
          %1357 = vmatprep.subr.mxu0 %v1356
          %v1358 = vand.u32 %v272, 4294901760
          %v1359 = vsub.f32 %v272, %v1358
          %v1360 = vand.u32 %v1359, 4294901760
          %1361 = vmatpush1.msra.mxu0 %v1360
          %v1362 = vand.u32 %v275, 4294901760
          %v1363 = vsub.f32 %v275, %v1362
          %v1364 = vand.u32 %v1363, 4294901760
          %1365 = vmatprep.subr.mxu0 %v1364
          %v1366 = vand.u32 %v274, 4294901760
          %v1367 = vsub.f32 %v274, %v1366
          %v1368 = vand.u32 %v1367, 4294901760
          %1369 = vmatpush1.msra.mxu0 %v1368
          %v1370 = vand.u32 %v277, 4294901760
          %v1371 = vsub.f32 %v277, %v1370
          %v1372 = vand.u32 %v1371, 4294901760
          %1373 = vmatprep.subr.mxu0 %v1372
          %v1374 = vand.u32 %v276, 4294901760
          %v1375 = vsub.f32 %v276, %v1374
          %v1376 = vand.u32 %v1375, 4294901760
          %1377 = vmatpush1.msra.mxu0 %v1376
          %v1378 = vand.u32 %v279, 4294901760
          %v1379 = vsub.f32 %v279, %v1378
          %v1380 = vand.u32 %v1379, 4294901760
          %1381 = vmatprep.subr.mxu0 %v1380
          %v1382 = vand.u32 %v278, 4294901760
          %v1383 = vsub.f32 %v278, %v1382
          %v1384 = vand.u32 %v1383, 4294901760
          %1385 = vmatpush1.msra.mxu0 %v1384
          %v1386 = vand.u32 %v281, 4294901760
          %v1387 = vsub.f32 %v281, %v1386
          %v1388 = vand.u32 %v1387, 4294901760
          %1389 = vmatprep.subr.mxu0 %v1388
          %v1390 = vand.u32 %v280, 4294901760
          %v1391 = vsub.f32 %v280, %v1390
          %v1392 = vand.u32 %v1391, 4294901760
          %1393 = vmatpush1.msra.mxu0 %v1392
          %v1394 = vand.u32 %v283, 4294901760
          %v1395 = vsub.f32 %v283, %v1394
          %v1396 = vand.u32 %v1395, 4294901760
          %1397 = vmatprep.subr.mxu0 %v1396
          %v1398 = vand.u32 %v282, 4294901760
          %v1399 = vsub.f32 %v282, %v1398
          %v1400 = vand.u32 %v1399, 4294901760
          %1401 = vmatpush1.msra.mxu0 %v1400
          %v1402 = vand.u32 %v285, 4294901760
          %v1403 = vsub.f32 %v285, %v1402
          %v1404 = vand.u32 %v1403, 4294901760
          %1405 = vmatprep.subr.mxu0 %v1404
          %v1406 = vand.u32 %v284, 4294901760
          %v1407 = vsub.f32 %v284, %v1406
          %v1408 = vand.u32 %v1407, 4294901760
          %1409 = vmatpush1.msra.mxu0 %v1408
          %v1410 = vand.u32 %v287, 4294901760
          %v1411 = vsub.f32 %v287, %v1410
          %v1412 = vand.u32 %v1411, 4294901760
          %1413 = vmatprep.subr.mxu0 %v1412
          %v1414 = vand.u32 %v286, 4294901760
          %v1415 = vsub.f32 %v286, %v1414
          %v1416 = vand.u32 %v1415, 4294901760
          %1417 = vmatpush1.msra.mxu0 %v1416
          %v1418 = vand.u32 %v289, 4294901760
          %v1419 = vsub.f32 %v289, %v1418
          %v1420 = vand.u32 %v1419, 4294901760
          %1421 = vmatprep.subr.mxu0 %v1420
          %v1422 = vand.u32 %v288, 4294901760
          %v1423 = vsub.f32 %v288, %v1422
          %v1424 = vand.u32 %v1423, 4294901760
          %1425 = vmatpush1.msra.mxu0 %v1424
          %v1426 = vand.u32 %v291, 4294901760
          %v1427 = vsub.f32 %v291, %v1426
          %v1428 = vand.u32 %v1427, 4294901760
          %1429 = vmatprep.subr.mxu0 %v1428
          %v1430 = vand.u32 %v290, 4294901760
          %v1431 = vsub.f32 %v290, %v1430
          %v1432 = vand.u32 %v1431, 4294901760
          %1433 = vmatpush1.msra.mxu0 %v1432
          %v1434 = vand.u32 %v293, 4294901760
          %v1435 = vsub.f32 %v293, %v1434
          %v1436 = vand.u32 %v1435, 4294901760
          %1437 = vmatprep.subr.mxu0 %v1436
          %v1438 = vand.u32 %v292, 4294901760
          %v1439 = vsub.f32 %v292, %v1438
          %v1440 = vand.u32 %v1439, 4294901760
          %1441 = vmatpush1.msra.mxu0 %v1440
          %v1442 = vand.u32 %v295, 4294901760
          %v1443 = vsub.f32 %v295, %v1442
          %v1444 = vand.u32 %v1443, 4294901760
          %1445 = vmatprep.subr.mxu0 %v1444
          %v1446 = vand.u32 %v294, 4294901760
          %v1447 = vsub.f32 %v294, %v1446
          %v1448 = vand.u32 %v1447, 4294901760
          %1449 = vmatpush1.msra.mxu0 %v1448
          %v1450 = vand.u32 %v297, 4294901760
          %v1451 = vsub.f32 %v297, %v1450
          %v1452 = vand.u32 %v1451, 4294901760
          %1453 = vmatprep.subr.mxu0 %v1452
          %v1454 = vand.u32 %v296, 4294901760
          %v1455 = vsub.f32 %v296, %v1454
          %v1456 = vand.u32 %v1455, 4294901760
          %1457 = vmatpush1.msra.mxu0 %v1456
          %v1458 = vand.u32 %v299, 4294901760
          %v1459 = vsub.f32 %v299, %v1458
          %v1460 = vand.u32 %v1459, 4294901760
          %1461 = vmatprep.subr.mxu0 %v1460
          %v1462 = vand.u32 %v298, 4294901760
          %v1463 = vsub.f32 %v298, %v1462
          %v1464 = vand.u32 %v1463, 4294901760
          %1465 = vmatpush1.msra.mxu0 %v1464
          %v1466 = vand.u32 %v301, 4294901760
          %v1467 = vsub.f32 %v301, %v1466
          %v1468 = vand.u32 %v1467, 4294901760
          %1469 = vmatprep.subr.mxu0 %v1468
          %v1470 = vand.u32 %v300, 4294901760
          %v1471 = vsub.f32 %v300, %v1470
          %v1472 = vand.u32 %v1471, 4294901760
          %1473 = vmatpush1.msra.mxu0 %v1472
          %v1474 = vand.u32 %v303, 4294901760
          %v1475 = vsub.f32 %v303, %v1474
          %v1476 = vand.u32 %v1475, 4294901760
          %1477 = vmatprep.subr.mxu0 %v1476
          %v1478 = vand.u32 %v302, 4294901760
          %v1479 = vsub.f32 %v302, %v1478
          %v1480 = vand.u32 %v1479, 4294901760
          %1481 = vmatpush1.msra.mxu0 %v1480
          %v1482 = vand.u32 %v305, 4294901760
          %v1483 = vsub.f32 %v305, %v1482
          %v1484 = vand.u32 %v1483, 4294901760
          %1485 = vmatprep.subr.mxu0 %v1484
          %v1486 = vand.u32 %v304, 4294901760
          %v1487 = vsub.f32 %v304, %v1486
          %v1488 = vand.u32 %v1487, 4294901760
          %1489 = vmatpush1.msra.mxu0 %v1488
          %v1490 = vand.u32 %v307, 4294901760
          %v1491 = vsub.f32 %v307, %v1490
          %v1492 = vand.u32 %v1491, 4294901760
          %1493 = vmatprep.subr.mxu0 %v1492
          %v1494 = vand.u32 %v306, 4294901760
          %v1495 = vsub.f32 %v306, %v1494
          %v1496 = vand.u32 %v1495, 4294901760
          %1497 = vmatpush1.msra.mxu0 %v1496
          %v1498 = vand.u32 %v309, 4294901760
          %v1499 = vsub.f32 %v309, %v1498
          %v1500 = vand.u32 %v1499, 4294901760
          %1501 = vmatprep.subr.mxu0 %v1500
          %v1502 = vand.u32 %v308, 4294901760
          %v1503 = vsub.f32 %v308, %v1502
          %v1504 = vand.u32 %v1503, 4294901760
          %1505 = vmatpush1.msra.mxu0 %v1504
          %v1506 = vand.u32 %v311, 4294901760
          %v1507 = vsub.f32 %v311, %v1506
          %v1508 = vand.u32 %v1507, 4294901760
          %1509 = vmatprep.subr.mxu0 %v1508
          %v1510 = vand.u32 %v310, 4294901760
          %v1511 = vsub.f32 %v310, %v1510
          %v1512 = vand.u32 %v1511, 4294901760
          %1513 = vmatpush1.msra.mxu0 %v1512
          %v1514 = vand.u32 %v233, 4294901760
          %1515 = vmatprep.mubr.f32.mxu0 %v1514
          %v1516 = vand.u32 %v232, 4294901760
          %1517 = vmatmul.mubr.f32.gmra.mrb[0].mxu0 %v1516
          %v1518 = vpop.f32.mrb[0].mxu0
          %v1519 = vadd.f32 %v1254, %v1518
          %v1520 = vpop.f32.mrb[0].mxu0
          %v1521 = vadd.f32 %v1256, %v1520
          %1522 = vdwg.mxu0
          %v1523 = vand.u32 %v249, 4294901760
          %1524 = vmatprep.subr.mxu0 %v1523
          %v1525 = vand.u32 %v248, 4294901760
          %1526 = vmatpush1.msra.mxu0 %v1525
          %v1527 = vand.u32 %v251, 4294901760
          %1528 = vmatprep.subr.mxu0 %v1527
          %v1529 = vand.u32 %v250, 4294901760
          %1530 = vmatpush1.msra.mxu0 %v1529
          %v1531 = vand.u32 %v253, 4294901760
          %1532 = vmatprep.subr.mxu0 %v1531
          %v1533 = vand.u32 %v252, 4294901760
          %1534 = vmatpush1.msra.mxu0 %v1533
          %v1535 = vand.u32 %v255, 4294901760
          %1536 = vmatprep.subr.mxu0 %v1535
          %v1537 = vand.u32 %v254, 4294901760
          %1538 = vmatpush1.msra.mxu0 %v1537
          %v1539 = vand.u32 %v257, 4294901760
          %1540 = vmatprep.subr.mxu0 %v1539
          %v1541 = vand.u32 %v256, 4294901760
          %1542 = vmatpush1.msra.mxu0 %v1541
          %v1543 = vand.u32 %v259, 4294901760
          %1544 = vmatprep.subr.mxu0 %v1543
          %v1545 = vand.u32 %v258, 4294901760
          %1546 = vmatpush1.msra.mxu0 %v1545
          %v1547 = vand.u32 %v261, 4294901760
          %1548 = vmatprep.subr.mxu0 %v1547
          %v1549 = vand.u32 %v260, 4294901760
          %1550 = vmatpush1.msra.mxu0 %v1549
          %v1551 = vand.u32 %v263, 4294901760
          %1552 = vmatprep.subr.mxu0 %v1551
          %v1553 = vand.u32 %v262, 4294901760
          %1554 = vmatpush1.msra.mxu0 %v1553
          %v1555 = vand.u32 %v265, 4294901760
          %1556 = vmatprep.subr.mxu0 %v1555
          %v1557 = vand.u32 %v264, 4294901760
          %1558 = vmatpush1.msra.mxu0 %v1557
          %v1559 = vand.u32 %v267, 4294901760
          %1560 = vmatprep.subr.mxu0 %v1559
          %v1561 = vand.u32 %v266, 4294901760
          %1562 = vmatpush1.msra.mxu0 %v1561
          %v1563 = vand.u32 %v269, 4294901760
          %1564 = vmatprep.subr.mxu0 %v1563
          %v1565 = vand.u32 %v268, 4294901760
          %1566 = vmatpush1.msra.mxu0 %v1565
          %v1567 = vand.u32 %v271, 4294901760
          %1568 = vmatprep.subr.mxu0 %v1567
          %v1569 = vand.u32 %v270, 4294901760
          %1570 = vmatpush1.msra.mxu0 %v1569
          %v1571 = vand.u32 %v273, 4294901760
          %1572 = vmatprep.subr.mxu0 %v1571
          %v1573 = vand.u32 %v272, 4294901760
          %1574 = vmatpush1.msra.mxu0 %v1573
          %v1575 = vand.u32 %v275, 4294901760
          %1576 = vmatprep.subr.mxu0 %v1575
          %v1577 = vand.u32 %v274, 4294901760
          %1578 = vmatpush1.msra.mxu0 %v1577
          %v1579 = vand.u32 %v277, 4294901760
          %1580 = vmatprep.subr.mxu0 %v1579
          %v1581 = vand.u32 %v276, 4294901760
          %1582 = vmatpush1.msra.mxu0 %v1581
          %v1583 = vand.u32 %v279, 4294901760
          %1584 = vmatprep.subr.mxu0 %v1583
          %v1585 = vand.u32 %v278, 4294901760
          %1586 = vmatpush1.msra.mxu0 %v1585
          %v1587 = vand.u32 %v281, 4294901760
          %1588 = vmatprep.subr.mxu0 %v1587
          %v1589 = vand.u32 %v280, 4294901760
          %1590 = vmatpush1.msra.mxu0 %v1589
          %v1591 = vand.u32 %v283, 4294901760
          %1592 = vmatprep.subr.mxu0 %v1591
          %v1593 = vand.u32 %v282, 4294901760
          %1594 = vmatpush1.msra.mxu0 %v1593
          %v1595 = vand.u32 %v285, 4294901760
          %1596 = vmatprep.subr.mxu0 %v1595
          %v1597 = vand.u32 %v284, 4294901760
          %1598 = vmatpush1.msra.mxu0 %v1597
          %v1599 = vand.u32 %v287, 4294901760
          %1600 = vmatprep.subr.mxu0 %v1599
          %v1601 = vand.u32 %v286, 4294901760
          %1602 = vmatpush1.msra.mxu0 %v1601
          %v1603 = vand.u32 %v289, 4294901760
          %1604 = vmatprep.subr.mxu0 %v1603
          %v1605 = vand.u32 %v288, 4294901760
          %1606 = vmatpush1.msra.mxu0 %v1605
          %v1607 = vand.u32 %v291, 4294901760
          %1608 = vmatprep.subr.mxu0 %v1607
          %v1609 = vand.u32 %v290, 4294901760
          %1610 = vmatpush1.msra.mxu0 %v1609
          %v1611 = vand.u32 %v293, 4294901760
          %1612 = vmatprep.subr.mxu0 %v1611
          %v1613 = vand.u32 %v292, 4294901760
          %1614 = vmatpush1.msra.mxu0 %v1613
          %v1615 = vand.u32 %v295, 4294901760
          %1616 = vmatprep.subr.mxu0 %v1615
          %v1617 = vand.u32 %v294, 4294901760
          %1618 = vmatpush1.msra.mxu0 %v1617
          %v1619 = vand.u32 %v297, 4294901760
          %1620 = vmatprep.subr.mxu0 %v1619
          %v1621 = vand.u32 %v296, 4294901760
          %1622 = vmatpush1.msra.mxu0 %v1621
          %v1623 = vand.u32 %v299, 4294901760
          %1624 = vmatprep.subr.mxu0 %v1623
          %v1625 = vand.u32 %v298, 4294901760
          %1626 = vmatpush1.msra.mxu0 %v1625
          %v1627 = vand.u32 %v301, 4294901760
          %1628 = vmatprep.subr.mxu0 %v1627
          %v1629 = vand.u32 %v300, 4294901760
          %1630 = vmatpush1.msra.mxu0 %v1629
          %v1631 = vand.u32 %v303, 4294901760
          %1632 = vmatprep.subr.mxu0 %v1631
          %v1633 = vand.u32 %v302, 4294901760
          %1634 = vmatpush1.msra.mxu0 %v1633
          %v1635 = vand.u32 %v305, 4294901760
          %1636 = vmatprep.subr.mxu0 %v1635
          %v1637 = vand.u32 %v304, 4294901760
          %1638 = vmatpush1.msra.mxu0 %v1637
          %v1639 = vand.u32 %v307, 4294901760
          %1640 = vmatprep.subr.mxu0 %v1639
          %v1641 = vand.u32 %v306, 4294901760
          %1642 = vmatpush1.msra.mxu0 %v1641
          %v1643 = vand.u32 %v309, 4294901760
          %1644 = vmatprep.subr.mxu0 %v1643
          %v1645 = vand.u32 %v308, 4294901760
          %1646 = vmatpush1.msra.mxu0 %v1645
          %v1647 = vand.u32 %v311, 4294901760
          %1648 = vmatprep.subr.mxu0 %v1647
          %v1649 = vand.u32 %v310, 4294901760
          %1650 = vmatpush1.msra.mxu0 %v1649
          %v1651 = vand.u32 %v233, 4294901760
          %1652 = vmatprep.mubr.f32.mxu0 %v1651
          %v1653 = vand.u32 %v232, 4294901760
          %1654 = vmatmul.mubr.f32.gmra.mrb[0].mxu0 %v1653
          %v1655 = vpop.f32.mrb[0].mxu0
          %v1656 = vadd.f32 %v1519, %v1655
          %v1657 = vpop.f32.mrb[0].mxu0
          %v1658 = vadd.f32 %v1521, %v1657
          %1659 = vdwg.mxu0
          %v1660 = vand.u32 %v313, 4294901760
          %1661 = vmatprep.subr.mxu0 %v1660
          %v1662 = vand.u32 %v312, 4294901760
          %1663 = vmatpush1.msra.mxu0 %v1662
          %v1664 = vand.u32 %v315, 4294901760
          %1665 = vmatprep.subr.mxu0 %v1664
          %v1666 = vand.u32 %v314, 4294901760
          %1667 = vmatpush1.msra.mxu0 %v1666
          %v1668 = vand.u32 %v317, 4294901760
          %1669 = vmatprep.subr.mxu0 %v1668
          %v1670 = vand.u32 %v316, 4294901760
          %1671 = vmatpush1.msra.mxu0 %v1670
          %v1672 = vand.u32 %v319, 4294901760
          %1673 = vmatprep.subr.mxu0 %v1672
          %v1674 = vand.u32 %v318, 4294901760
          %1675 = vmatpush1.msra.mxu0 %v1674
          %v1676 = vand.u32 %v321, 4294901760
          %1677 = vmatprep.subr.mxu0 %v1676
          %v1678 = vand.u32 %v320, 4294901760
          %1679 = vmatpush1.msra.mxu0 %v1678
          %v1680 = vand.u32 %v323, 4294901760
          %1681 = vmatprep.subr.mxu0 %v1680
          %v1682 = vand.u32 %v322, 4294901760
          %1683 = vmatpush1.msra.mxu0 %v1682
          %v1684 = vand.u32 %v325, 4294901760
          %1685 = vmatprep.subr.mxu0 %v1684
          %v1686 = vand.u32 %v324, 4294901760
          %1687 = vmatpush1.msra.mxu0 %v1686
          %v1688 = vand.u32 %v327, 4294901760
          %1689 = vmatprep.subr.mxu0 %v1688
          %v1690 = vand.u32 %v326, 4294901760
          %1691 = vmatpush1.msra.mxu0 %v1690
          %v1692 = vand.u32 %v329, 4294901760
          %1693 = vmatprep.subr.mxu0 %v1692
          %v1694 = vand.u32 %v328, 4294901760
          %1695 = vmatpush1.msra.mxu0 %v1694
          %v1696 = vand.u32 %v331, 4294901760
          %1697 = vmatprep.subr.mxu0 %v1696
          %v1698 = vand.u32 %v330, 4294901760
          %1699 = vmatpush1.msra.mxu0 %v1698
          %v1700 = vand.u32 %v333, 4294901760
          %1701 = vmatprep.subr.mxu0 %v1700
          %v1702 = vand.u32 %v332, 4294901760
          %1703 = vmatpush1.msra.mxu0 %v1702
          %v1704 = vand.u32 %v335, 4294901760
          %1705 = vmatprep.subr.mxu0 %v1704
          %v1706 = vand.u32 %v334, 4294901760
          %1707 = vmatpush1.msra.mxu0 %v1706
          %v1708 = vand.u32 %v337, 4294901760
          %1709 = vmatprep.subr.mxu0 %v1708
          %v1710 = vand.u32 %v336, 4294901760
          %1711 = vmatpush1.msra.mxu0 %v1710
          %v1712 = vand.u32 %v339, 4294901760
          %1713 = vmatprep.subr.mxu0 %v1712
          %v1714 = vand.u32 %v338, 4294901760
          %1715 = vmatpush1.msra.mxu0 %v1714
          %v1716 = vand.u32 %v341, 4294901760
          %1717 = vmatprep.subr.mxu0 %v1716
          %v1718 = vand.u32 %v340, 4294901760
          %1719 = vmatpush1.msra.mxu0 %v1718
          %v1720 = vand.u32 %v343, 4294901760
          %1721 = vmatprep.subr.mxu0 %v1720
          %v1722 = vand.u32 %v342, 4294901760
          %1723 = vmatpush1.msra.mxu0 %v1722
          %v1724 = vand.u32 %v345, 4294901760
          %1725 = vmatprep.subr.mxu0 %v1724
          %v1726 = vand.u32 %v344, 4294901760
          %1727 = vmatpush1.msra.mxu0 %v1726
          %v1728 = vand.u32 %v347, 4294901760
          %1729 = vmatprep.subr.mxu0 %v1728
          %v1730 = vand.u32 %v346, 4294901760
          %1731 = vmatpush1.msra.mxu0 %v1730
          %v1732 = vand.u32 %v349, 4294901760
          %1733 = vmatprep.subr.mxu0 %v1732
          %v1734 = vand.u32 %v348, 4294901760
          %1735 = vmatpush1.msra.mxu0 %v1734
          %v1736 = vand.u32 %v351, 4294901760
          %1737 = vmatprep.subr.mxu0 %v1736
          %v1738 = vand.u32 %v350, 4294901760
          %1739 = vmatpush1.msra.mxu0 %v1738
          %v1740 = vand.u32 %v353, 4294901760
          %1741 = vmatprep.subr.mxu0 %v1740
          %v1742 = vand.u32 %v352, 4294901760
          %1743 = vmatpush1.msra.mxu0 %v1742
          %v1744 = vand.u32 %v355, 4294901760
          %1745 = vmatprep.subr.mxu0 %v1744
          %v1746 = vand.u32 %v354, 4294901760
          %1747 = vmatpush1.msra.mxu0 %v1746
          %v1748 = vand.u32 %v357, 4294901760
          %1749 = vmatprep.subr.mxu0 %v1748
          %v1750 = vand.u32 %v356, 4294901760
          %1751 = vmatpush1.msra.mxu0 %v1750
          %v1752 = vand.u32 %v359, 4294901760
          %1753 = vmatprep.subr.mxu0 %v1752
          %v1754 = vand.u32 %v358, 4294901760
          %1755 = vmatpush1.msra.mxu0 %v1754
          %v1756 = vand.u32 %v361, 4294901760
          %1757 = vmatprep.subr.mxu0 %v1756
          %v1758 = vand.u32 %v360, 4294901760
          %1759 = vmatpush1.msra.mxu0 %v1758
          %v1760 = vand.u32 %v363, 4294901760
          %1761 = vmatprep.subr.mxu0 %v1760
          %v1762 = vand.u32 %v362, 4294901760
          %1763 = vmatpush1.msra.mxu0 %v1762
          %v1764 = vand.u32 %v365, 4294901760
          %1765 = vmatprep.subr.mxu0 %v1764
          %v1766 = vand.u32 %v364, 4294901760
          %1767 = vmatpush1.msra.mxu0 %v1766
          %v1768 = vand.u32 %v367, 4294901760
          %1769 = vmatprep.subr.mxu0 %v1768
          %v1770 = vand.u32 %v366, 4294901760
          %1771 = vmatpush1.msra.mxu0 %v1770
          %v1772 = vand.u32 %v369, 4294901760
          %1773 = vmatprep.subr.mxu0 %v1772
          %v1774 = vand.u32 %v368, 4294901760
          %1775 = vmatpush1.msra.mxu0 %v1774
          %v1776 = vand.u32 %v371, 4294901760
          %1777 = vmatprep.subr.mxu0 %v1776
          %v1778 = vand.u32 %v370, 4294901760
          %1779 = vmatpush1.msra.mxu0 %v1778
          %v1780 = vand.u32 %v373, 4294901760
          %1781 = vmatprep.subr.mxu0 %v1780
          %v1782 = vand.u32 %v372, 4294901760
          %1783 = vmatpush1.msra.mxu0 %v1782
          %v1784 = vand.u32 %v375, 4294901760
          %1785 = vmatprep.subr.mxu0 %v1784
          %v1786 = vand.u32 %v374, 4294901760
          %1787 = vmatpush1.msra.mxu0 %v1786
          %v1788 = vand.u32 %v247, 4294901760
          %v1789 = vsub.f32 %v247, %v1788
          %v1790 = vand.u32 %v1789, 4294901760
          %v1791 = vsub.f32 %v1789, %v1790
          %v1792 = vand.u32 %v1791, 4294901760
          %1793 = vmatprep.mubr.f32.mxu0 %v1792
          %v1794 = vand.u32 %v241, 4294901760
          %v1795 = vsub.f32 %v241, %v1794
          %v1796 = vand.u32 %v1795, 4294901760
          %v1797 = vsub.f32 %v1795, %v1796
          %v1798 = vand.u32 %v1797, 4294901760
          %1799 = vmatmul.mubr.f32.gmra.mrb[0].mxu0 %v1798
          %v1800 = vpop.f32.mrb[0].mxu0
          %v1801 = vadd.f32 %v1656, %v1800
          %v1802 = vpop.f32.mrb[0].mxu0
          %v1803 = vadd.f32 %v1658, %v1802
          %1804 = vdwg.mxu0
          %v1805 = vand.u32 %v313, 4294901760
          %v1806 = vsub.f32 %v313, %v1805
          %v1807 = vand.u32 %v1806, 4294901760
          %v1808 = vsub.f32 %v1806, %v1807
          %v1809 = vand.u32 %v1808, 4294901760
          %1810 = vmatprep.subr.mxu0 %v1809
          %v1811 = vand.u32 %v312, 4294901760
          %v1812 = vsub.f32 %v312, %v1811
          %v1813 = vand.u32 %v1812, 4294901760
          %v1814 = vsub.f32 %v1812, %v1813
          %v1815 = vand.u32 %v1814, 4294901760
          %1816 = vmatpush1.msra.mxu0 %v1815
          %v1817 = vand.u32 %v315, 4294901760
          %v1818 = vsub.f32 %v315, %v1817
          %v1819 = vand.u32 %v1818, 4294901760
          %v1820 = vsub.f32 %v1818, %v1819
          %v1821 = vand.u32 %v1820, 4294901760
          %1822 = vmatprep.subr.mxu0 %v1821
          %v1823 = vand.u32 %v314, 4294901760
          %v1824 = vsub.f32 %v314, %v1823
          %v1825 = vand.u32 %v1824, 4294901760
          %v1826 = vsub.f32 %v1824, %v1825
          %v1827 = vand.u32 %v1826, 4294901760
          %1828 = vmatpush1.msra.mxu0 %v1827
          %v1829 = vand.u32 %v317, 4294901760
          %v1830 = vsub.f32 %v317, %v1829
          %v1831 = vand.u32 %v1830, 4294901760
          %v1832 = vsub.f32 %v1830, %v1831
          %v1833 = vand.u32 %v1832, 4294901760
          %1834 = vmatprep.subr.mxu0 %v1833
          %v1835 = vand.u32 %v316, 4294901760
          %v1836 = vsub.f32 %v316, %v1835
          %v1837 = vand.u32 %v1836, 4294901760
          %v1838 = vsub.f32 %v1836, %v1837
          %v1839 = vand.u32 %v1838, 4294901760
          %1840 = vmatpush1.msra.mxu0 %v1839
          %v1841 = vand.u32 %v319, 4294901760
          %v1842 = vsub.f32 %v319, %v1841
          %v1843 = vand.u32 %v1842, 4294901760
          %v1844 = vsub.f32 %v1842, %v1843
          %v1845 = vand.u32 %v1844, 4294901760
          %1846 = vmatprep.subr.mxu0 %v1845
          %v1847 = vand.u32 %v318, 4294901760
          %v1848 = vsub.f32 %v318, %v1847
          %v1849 = vand.u32 %v1848, 4294901760
          %v1850 = vsub.f32 %v1848, %v1849
          %v1851 = vand.u32 %v1850, 4294901760
          %1852 = vmatpush1.msra.mxu0 %v1851
          %v1853 = vand.u32 %v321, 4294901760
          %v1854 = vsub.f32 %v321, %v1853
          %v1855 = vand.u32 %v1854, 4294901760
          %v1856 = vsub.f32 %v1854, %v1855
          %v1857 = vand.u32 %v1856, 4294901760
          %1858 = vmatprep.subr.mxu0 %v1857
          %v1859 = vand.u32 %v320, 4294901760
          %v1860 = vsub.f32 %v320, %v1859
          %v1861 = vand.u32 %v1860, 4294901760
          %v1862 = vsub.f32 %v1860, %v1861
          %v1863 = vand.u32 %v1862, 4294901760
          %1864 = vmatpush1.msra.mxu0 %v1863
          %v1865 = vand.u32 %v323, 4294901760
          %v1866 = vsub.f32 %v323, %v1865
          %v1867 = vand.u32 %v1866, 4294901760
          %v1868 = vsub.f32 %v1866, %v1867
          %v1869 = vand.u32 %v1868, 4294901760
          %1870 = vmatprep.subr.mxu0 %v1869
          %v1871 = vand.u32 %v322, 4294901760
          %v1872 = vsub.f32 %v322, %v1871
          %v1873 = vand.u32 %v1872, 4294901760
          %v1874 = vsub.f32 %v1872, %v1873
          %v1875 = vand.u32 %v1874, 4294901760
          %1876 = vmatpush1.msra.mxu0 %v1875
          %v1877 = vand.u32 %v325, 4294901760
          %v1878 = vsub.f32 %v325, %v1877
          %v1879 = vand.u32 %v1878, 4294901760
          %v1880 = vsub.f32 %v1878, %v1879
          %v1881 = vand.u32 %v1880, 4294901760
          %1882 = vmatprep.subr.mxu0 %v1881
          %v1883 = vand.u32 %v324, 4294901760
          %v1884 = vsub.f32 %v324, %v1883
          %v1885 = vand.u32 %v1884, 4294901760
          %v1886 = vsub.f32 %v1884, %v1885
          %v1887 = vand.u32 %v1886, 4294901760
          %1888 = vmatpush1.msra.mxu0 %v1887
          %v1889 = vand.u32 %v327, 4294901760
          %v1890 = vsub.f32 %v327, %v1889
          %v1891 = vand.u32 %v1890, 4294901760
          %v1892 = vsub.f32 %v1890, %v1891
          %v1893 = vand.u32 %v1892, 4294901760
          %1894 = vmatprep.subr.mxu0 %v1893
          %v1895 = vand.u32 %v326, 4294901760
          %v1896 = vsub.f32 %v326, %v1895
          %v1897 = vand.u32 %v1896, 4294901760
          %v1898 = vsub.f32 %v1896, %v1897
          %v1899 = vand.u32 %v1898, 4294901760
          %1900 = vmatpush1.msra.mxu0 %v1899
          %v1901 = vand.u32 %v329, 4294901760
          %v1902 = vsub.f32 %v329, %v1901
          %v1903 = vand.u32 %v1902, 4294901760
          %v1904 = vsub.f32 %v1902, %v1903
          %v1905 = vand.u32 %v1904, 4294901760
          %1906 = vmatprep.subr.mxu0 %v1905
          %v1907 = vand.u32 %v328, 4294901760
          %v1908 = vsub.f32 %v328, %v1907
          %v1909 = vand.u32 %v1908, 4294901760
          %v1910 = vsub.f32 %v1908, %v1909
          %v1911 = vand.u32 %v1910, 4294901760
          %1912 = vmatpush1.msra.mxu0 %v1911
          %v1913 = vand.u32 %v331, 4294901760
          %v1914 = vsub.f32 %v331, %v1913
          %v1915 = vand.u32 %v1914, 4294901760
          %v1916 = vsub.f32 %v1914, %v1915
          %v1917 = vand.u32 %v1916, 4294901760
          %1918 = vmatprep.subr.mxu0 %v1917
          %v1919 = vand.u32 %v330, 4294901760
          %v1920 = vsub.f32 %v330, %v1919
          %v1921 = vand.u32 %v1920, 4294901760
          %v1922 = vsub.f32 %v1920, %v1921
          %v1923 = vand.u32 %v1922, 4294901760
          %1924 = vmatpush1.msra.mxu0 %v1923
          %v1925 = vand.u32 %v333, 4294901760
          %v1926 = vsub.f32 %v333, %v1925
          %v1927 = vand.u32 %v1926, 4294901760
          %v1928 = vsub.f32 %v1926, %v1927
          %v1929 = vand.u32 %v1928, 4294901760
          %1930 = vmatprep.subr.mxu0 %v1929
          %v1931 = vand.u32 %v332, 4294901760
          %v1932 = vsub.f32 %v332, %v1931
          %v1933 = vand.u32 %v1932, 4294901760
          %v1934 = vsub.f32 %v1932, %v1933
          %v1935 = vand.u32 %v1934, 4294901760
          %1936 = vmatpush1.msra.mxu0 %v1935
          %v1937 = vand.u32 %v335, 4294901760
          %v1938 = vsub.f32 %v335, %v1937
          %v1939 = vand.u32 %v1938, 4294901760
          %v1940 = vsub.f32 %v1938, %v1939
          %v1941 = vand.u32 %v1940, 4294901760
          %1942 = vmatprep.subr.mxu0 %v1941
          %v1943 = vand.u32 %v334, 4294901760
          %v1944 = vsub.f32 %v334, %v1943
          %v1945 = vand.u32 %v1944, 4294901760
          %v1946 = vsub.f32 %v1944, %v1945
          %v1947 = vand.u32 %v1946, 4294901760
          %1948 = vmatpush1.msra.mxu0 %v1947
          %v1949 = vand.u32 %v337, 4294901760
          %v1950 = vsub.f32 %v337, %v1949
          %v1951 = vand.u32 %v1950, 4294901760
          %v1952 = vsub.f32 %v1950, %v1951
          %v1953 = vand.u32 %v1952, 4294901760
          %1954 = vmatprep.subr.mxu0 %v1953
          %v1955 = vand.u32 %v336, 4294901760
          %v1956 = vsub.f32 %v336, %v1955
          %v1957 = vand.u32 %v1956, 4294901760
          %v1958 = vsub.f32 %v1956, %v1957
          %v1959 = vand.u32 %v1958, 4294901760
          %1960 = vmatpush1.msra.mxu0 %v1959
          %v1961 = vand.u32 %v339, 4294901760
          %v1962 = vsub.f32 %v339, %v1961
          %v1963 = vand.u32 %v1962, 4294901760
          %v1964 = vsub.f32 %v1962, %v1963
          %v1965 = vand.u32 %v1964, 4294901760
          %1966 = vmatprep.subr.mxu0 %v1965
          %v1967 = vand.u32 %v338, 4294901760
          %v1968 = vsub.f32 %v338, %v1967
          %v1969 = vand.u32 %v1968, 4294901760
          %v1970 = vsub.f32 %v1968, %v1969
          %v1971 = vand.u32 %v1970, 4294901760
          %1972 = vmatpush1.msra.mxu0 %v1971
          %v1973 = vand.u32 %v341, 4294901760
          %v1974 = vsub.f32 %v341, %v1973
          %v1975 = vand.u32 %v1974, 4294901760
          %v1976 = vsub.f32 %v1974, %v1975
          %v1977 = vand.u32 %v1976, 4294901760
          %1978 = vmatprep.subr.mxu0 %v1977
          %v1979 = vand.u32 %v340, 4294901760
          %v1980 = vsub.f32 %v340, %v1979
          %v1981 = vand.u32 %v1980, 4294901760
          %v1982 = vsub.f32 %v1980, %v1981
          %v1983 = vand.u32 %v1982, 4294901760
          %1984 = vmatpush1.msra.mxu0 %v1983
          %v1985 = vand.u32 %v343, 4294901760
          %v1986 = vsub.f32 %v343, %v1985
          %v1987 = vand.u32 %v1986, 4294901760
          %v1988 = vsub.f32 %v1986, %v1987
          %v1989 = vand.u32 %v1988, 4294901760
          %1990 = vmatprep.subr.mxu0 %v1989
          %v1991 = vand.u32 %v342, 4294901760
          %v1992 = vsub.f32 %v342, %v1991
          %v1993 = vand.u32 %v1992, 4294901760
          %v1994 = vsub.f32 %v1992, %v1993
          %v1995 = vand.u32 %v1994, 4294901760
          %1996 = vmatpush1.msra.mxu0 %v1995
          %v1997 = vand.u32 %v345, 4294901760
          %v1998 = vsub.f32 %v345, %v1997
          %v1999 = vand.u32 %v1998, 4294901760
          %v2000 = vsub.f32 %v1998, %v1999
          %v2001 = vand.u32 %v2000, 4294901760
          %2002 = vmatprep.subr.mxu0 %v2001
          %v2003 = vand.u32 %v344, 4294901760
          %v2004 = vsub.f32 %v344, %v2003
          %v2005 = vand.u32 %v2004, 4294901760
          %v2006 = vsub.f32 %v2004, %v2005
          %v2007 = vand.u32 %v2006, 4294901760
          %2008 = vmatpush1.msra.mxu0 %v2007
          %v2009 = vand.u32 %v347, 4294901760
          %v2010 = vsub.f32 %v347, %v2009
          %v2011 = vand.u32 %v2010, 4294901760
          %v2012 = vsub.f32 %v2010, %v2011
          %v2013 = vand.u32 %v2012, 4294901760
          %2014 = vmatprep.subr.mxu0 %v2013
          %v2015 = vand.u32 %v346, 4294901760
          %v2016 = vsub.f32 %v346, %v2015
          %v2017 = vand.u32 %v2016, 4294901760
          %v2018 = vsub.f32 %v2016, %v2017
          %v2019 = vand.u32 %v2018, 4294901760
          %2020 = vmatpush1.msra.mxu0 %v2019
          %v2021 = vand.u32 %v349, 4294901760
          %v2022 = vsub.f32 %v349, %v2021
          %v2023 = vand.u32 %v2022, 4294901760
          %v2024 = vsub.f32 %v2022, %v2023
          %v2025 = vand.u32 %v2024, 4294901760
          %2026 = vmatprep.subr.mxu0 %v2025
          %v2027 = vand.u32 %v348, 4294901760
          %v2028 = vsub.f32 %v348, %v2027
          %v2029 = vand.u32 %v2028, 4294901760
          %v2030 = vsub.f32 %v2028, %v2029
          %v2031 = vand.u32 %v2030, 4294901760
          %2032 = vmatpush1.msra.mxu0 %v2031
          %v2033 = vand.u32 %v351, 4294901760
          %v2034 = vsub.f32 %v351, %v2033
          %v2035 = vand.u32 %v2034, 4294901760
          %v2036 = vsub.f32 %v2034, %v2035
          %v2037 = vand.u32 %v2036, 4294901760
          %2038 = vmatprep.subr.mxu0 %v2037
          %v2039 = vand.u32 %v350, 4294901760
          %v2040 = vsub.f32 %v350, %v2039
          %v2041 = vand.u32 %v2040, 4294901760
          %v2042 = vsub.f32 %v2040, %v2041
          %v2043 = vand.u32 %v2042, 4294901760
          %2044 = vmatpush1.msra.mxu0 %v2043
          %v2045 = vand.u32 %v353, 4294901760
          %v2046 = vsub.f32 %v353, %v2045
          %v2047 = vand.u32 %v2046, 4294901760
          %v2048 = vsub.f32 %v2046, %v2047
          %v2049 = vand.u32 %v2048, 4294901760
          %2050 = vmatprep.subr.mxu0 %v2049
          %v2051 = vand.u32 %v352, 4294901760
          %v2052 = vsub.f32 %v352, %v2051
          %v2053 = vand.u32 %v2052, 4294901760
          %v2054 = vsub.f32 %v2052, %v2053
          %v2055 = vand.u32 %v2054, 4294901760
          %2056 = vmatpush1.msra.mxu0 %v2055
          %v2057 = vand.u32 %v355, 4294901760
          %v2058 = vsub.f32 %v355, %v2057
          %v2059 = vand.u32 %v2058, 4294901760
          %v2060 = vsub.f32 %v2058, %v2059
          %v2061 = vand.u32 %v2060, 4294901760
          %2062 = vmatprep.subr.mxu0 %v2061
          %v2063 = vand.u32 %v354, 4294901760
          %v2064 = vsub.f32 %v354, %v2063
          %v2065 = vand.u32 %v2064, 4294901760
          %v2066 = vsub.f32 %v2064, %v2065
          %v2067 = vand.u32 %v2066, 4294901760
          %2068 = vmatpush1.msra.mxu0 %v2067
          %v2069 = vand.u32 %v357, 4294901760
          %v2070 = vsub.f32 %v357, %v2069
          %v2071 = vand.u32 %v2070, 4294901760
          %v2072 = vsub.f32 %v2070, %v2071
          %v2073 = vand.u32 %v2072, 4294901760
          %2074 = vmatprep.subr.mxu0 %v2073
          %v2075 = vand.u32 %v356, 4294901760
          %v2076 = vsub.f32 %v356, %v2075
          %v2077 = vand.u32 %v2076, 4294901760
          %v2078 = vsub.f32 %v2076, %v2077
          %v2079 = vand.u32 %v2078, 4294901760
          %2080 = vmatpush1.msra.mxu0 %v2079
          %v2081 = vand.u32 %v359, 4294901760
          %v2082 = vsub.f32 %v359, %v2081
          %v2083 = vand.u32 %v2082, 4294901760
          %v2084 = vsub.f32 %v2082, %v2083
          %v2085 = vand.u32 %v2084, 4294901760
          %2086 = vmatprep.subr.mxu0 %v2085
          %v2087 = vand.u32 %v358, 4294901760
          %v2088 = vsub.f32 %v358, %v2087
          %v2089 = vand.u32 %v2088, 4294901760
          %v2090 = vsub.f32 %v2088, %v2089
          %v2091 = vand.u32 %v2090, 4294901760
          %2092 = vmatpush1.msra.mxu0 %v2091
          %v2093 = vand.u32 %v361, 4294901760
          %v2094 = vsub.f32 %v361, %v2093
          %v2095 = vand.u32 %v2094, 4294901760
          %v2096 = vsub.f32 %v2094, %v2095
          %v2097 = vand.u32 %v2096, 4294901760
          %2098 = vmatprep.subr.mxu0 %v2097
          %v2099 = vand.u32 %v360, 4294901760
          %v2100 = vsub.f32 %v360, %v2099
          %v2101 = vand.u32 %v2100, 4294901760
          %v2102 = vsub.f32 %v2100, %v2101
          %v2103 = vand.u32 %v2102, 4294901760
          %2104 = vmatpush1.msra.mxu0 %v2103
          %v2105 = vand.u32 %v363, 4294901760
          %v2106 = vsub.f32 %v363, %v2105
          %v2107 = vand.u32 %v2106, 4294901760
          %v2108 = vsub.f32 %v2106, %v2107
          %v2109 = vand.u32 %v2108, 4294901760
          %2110 = vmatprep.subr.mxu0 %v2109
          %v2111 = vand.u32 %v362, 4294901760
          %v2112 = vsub.f32 %v362, %v2111
          %v2113 = vand.u32 %v2112, 4294901760
          %v2114 = vsub.f32 %v2112, %v2113
          %v2115 = vand.u32 %v2114, 4294901760
          %2116 = vmatpush1.msra.mxu0 %v2115
          %v2117 = vand.u32 %v365, 4294901760
          %v2118 = vsub.f32 %v365, %v2117
          %v2119 = vand.u32 %v2118, 4294901760
          %v2120 = vsub.f32 %v2118, %v2119
          %v2121 = vand.u32 %v2120, 4294901760
          %2122 = vmatprep.subr.mxu0 %v2121
          %v2123 = vand.u32 %v364, 4294901760
          %v2124 = vsub.f32 %v364, %v2123
          %v2125 = vand.u32 %v2124, 4294901760
          %v2126 = vsub.f32 %v2124, %v2125
          %v2127 = vand.u32 %v2126, 4294901760
          %2128 = vmatpush1.msra.mxu0 %v2127
          %v2129 = vand.u32 %v367, 4294901760
          %v2130 = vsub.f32 %v367, %v2129
          %v2131 = vand.u32 %v2130, 4294901760
          %v2132 = vsub.f32 %v2130, %v2131
          %v2133 = vand.u32 %v2132, 4294901760
          %2134 = vmatprep.subr.mxu0 %v2133
          %v2135 = vand.u32 %v366, 4294901760
          %v2136 = vsub.f32 %v366, %v2135
          %v2137 = vand.u32 %v2136, 4294901760
          %v2138 = vsub.f32 %v2136, %v2137
          %v2139 = vand.u32 %v2138, 4294901760
          %2140 = vmatpush1.msra.mxu0 %v2139
          %v2141 = vand.u32 %v369, 4294901760
          %v2142 = vsub.f32 %v369, %v2141
          %v2143 = vand.u32 %v2142, 4294901760
          %v2144 = vsub.f32 %v2142, %v2143
          %v2145 = vand.u32 %v2144, 4294901760
          %2146 = vmatprep.subr.mxu0 %v2145
          %v2147 = vand.u32 %v368, 4294901760
          %v2148 = vsub.f32 %v368, %v2147
          %v2149 = vand.u32 %v2148, 4294901760
          %v2150 = vsub.f32 %v2148, %v2149
          %v2151 = vand.u32 %v2150, 4294901760
          %2152 = vmatpush1.msra.mxu0 %v2151
          %v2153 = vand.u32 %v371, 4294901760
          %v2154 = vsub.f32 %v371, %v2153
          %v2155 = vand.u32 %v2154, 4294901760
          %v2156 = vsub.f32 %v2154, %v2155
          %v2157 = vand.u32 %v2156, 4294901760
          %2158 = vmatprep.subr.mxu0 %v2157
          %v2159 = vand.u32 %v370, 4294901760
          %v2160 = vsub.f32 %v370, %v2159
          %v2161 = vand.u32 %v2160, 4294901760
          %v2162 = vsub.f32 %v2160, %v2161
          %v2163 = vand.u32 %v2162, 4294901760
          %2164 = vmatpush1.msra.mxu0 %v2163
          %v2165 = vand.u32 %v373, 4294901760
          %v2166 = vsub.f32 %v373, %v2165
          %v2167 = vand.u32 %v2166, 4294901760
          %v2168 = vsub.f32 %v2166, %v2167
          %v2169 = vand.u32 %v2168, 4294901760
          %2170 = vmatprep.subr.mxu0 %v2169
          %v2171 = vand.u32 %v372, 4294901760
          %v2172 = vsub.f32 %v372, %v2171
          %v2173 = vand.u32 %v2172, 4294901760
          %v2174 = vsub.f32 %v2172, %v2173
          %v2175 = vand.u32 %v2174, 4294901760
          %2176 = vmatpush1.msra.mxu0 %v2175
          %v2177 = vand.u32 %v375, 4294901760
          %v2178 = vsub.f32 %v375, %v2177
          %v2179 = vand.u32 %v2178, 4294901760
          %v2180 = vsub.f32 %v2178, %v2179
          %v2181 = vand.u32 %v2180, 4294901760
          %2182 = vmatprep.subr.mxu0 %v2181
          %v2183 = vand.u32 %v374, 4294901760
          %v2184 = vsub.f32 %v374, %v2183
          %v2185 = vand.u32 %v2184, 4294901760
          %v2186 = vsub.f32 %v2184, %v2185
          %v2187 = vand.u32 %v2186, 4294901760
          %2188 = vmatpush1.msra.mxu0 %v2187
          %v2189 = vand.u32 %v247, 4294901760
          %2190 = vmatprep.mubr.f32.mxu0 %v2189
          %v2191 = vand.u32 %v241, 4294901760
          %2192 = vmatmul.mubr.f32.gmra.mrb[0].mxu0 %v2191
          %v2193 = vpop.f32.mrb[0].mxu0
          %v2194 = vadd.f32 %v1801, %v2193
          %v2195 = vpop.f32.mrb[0].mxu0
          %v2196 = vadd.f32 %v1803, %v2195
          %2197 = vdwg.mxu0
          %v2198 = vand.u32 %v313, 4294901760
          %v2199 = vsub.f32 %v313, %v2198
          %2200 = vmatprep.subr.mxu0 %v2199
          %v2201 = vand.u32 %v312, 4294901760
          %v2202 = vsub.f32 %v312, %v2201
          %2203 = vmatpush1.msra.mxu0 %v2202
          %v2204 = vand.u32 %v315, 4294901760
          %v2205 = vsub.f32 %v315, %v2204
          %2206 = vmatprep.subr.mxu0 %v2205
          %v2207 = vand.u32 %v314, 4294901760
          %v2208 = vsub.f32 %v314, %v2207
          %2209 = vmatpush1.msra.mxu0 %v2208
          %v2210 = vand.u32 %v317, 4294901760
          %v2211 = vsub.f32 %v317, %v2210
          %2212 = vmatprep.subr.mxu0 %v2211
          %v2213 = vand.u32 %v316, 4294901760
          %v2214 = vsub.f32 %v316, %v2213
          %2215 = vmatpush1.msra.mxu0 %v2214
          %v2216 = vand.u32 %v319, 4294901760
          %v2217 = vsub.f32 %v319, %v2216
          %2218 = vmatprep.subr.mxu0 %v2217
          %v2219 = vand.u32 %v318, 4294901760
          %v2220 = vsub.f32 %v318, %v2219
          %2221 = vmatpush1.msra.mxu0 %v2220
          %v2222 = vand.u32 %v321, 4294901760
          %v2223 = vsub.f32 %v321, %v2222
          %2224 = vmatprep.subr.mxu0 %v2223
          %v2225 = vand.u32 %v320, 4294901760
          %v2226 = vsub.f32 %v320, %v2225
          %2227 = vmatpush1.msra.mxu0 %v2226
          %v2228 = vand.u32 %v323, 4294901760
          %v2229 = vsub.f32 %v323, %v2228
          %2230 = vmatprep.subr.mxu0 %v2229
          %v2231 = vand.u32 %v322, 4294901760
          %v2232 = vsub.f32 %v322, %v2231
          %2233 = vmatpush1.msra.mxu0 %v2232
          %v2234 = vand.u32 %v325, 4294901760
          %v2235 = vsub.f32 %v325, %v2234
          %2236 = vmatprep.subr.mxu0 %v2235
          %v2237 = vand.u32 %v324, 4294901760
          %v2238 = vsub.f32 %v324, %v2237
          %2239 = vmatpush1.msra.mxu0 %v2238
          %v2240 = vand.u32 %v327, 4294901760
          %v2241 = vsub.f32 %v327, %v2240
          %2242 = vmatprep.subr.mxu0 %v2241
          %v2243 = vand.u32 %v326, 4294901760
          %v2244 = vsub.f32 %v326, %v2243
          %2245 = vmatpush1.msra.mxu0 %v2244
          %v2246 = vand.u32 %v329, 4294901760
          %v2247 = vsub.f32 %v329, %v2246
          %2248 = vmatprep.subr.mxu0 %v2247
          %v2249 = vand.u32 %v328, 4294901760
          %v2250 = vsub.f32 %v328, %v2249
          %2251 = vmatpush1.msra.mxu0 %v2250
          %v2252 = vand.u32 %v331, 4294901760
          %v2253 = vsub.f32 %v331, %v2252
          %2254 = vmatprep.subr.mxu0 %v2253
          %v2255 = vand.u32 %v330, 4294901760
          %v2256 = vsub.f32 %v330, %v2255
          %2257 = vmatpush1.msra.mxu0 %v2256
          %v2258 = vand.u32 %v333, 4294901760
          %v2259 = vsub.f32 %v333, %v2258
          %2260 = vmatprep.subr.mxu0 %v2259
          %v2261 = vand.u32 %v332, 4294901760
          %v2262 = vsub.f32 %v332, %v2261
          %2263 = vmatpush1.msra.mxu0 %v2262
          %v2264 = vand.u32 %v335, 4294901760
          %v2265 = vsub.f32 %v335, %v2264
          %2266 = vmatprep.subr.mxu0 %v2265
          %v2267 = vand.u32 %v334, 4294901760
          %v2268 = vsub.f32 %v334, %v2267
          %2269 = vmatpush1.msra.mxu0 %v2268
          %v2270 = vand.u32 %v337, 4294901760
          %v2271 = vsub.f32 %v337, %v2270
          %2272 = vmatprep.subr.mxu0 %v2271
          %v2273 = vand.u32 %v336, 4294901760
          %v2274 = vsub.f32 %v336, %v2273
          %2275 = vmatpush1.msra.mxu0 %v2274
          %v2276 = vand.u32 %v339, 4294901760
          %v2277 = vsub.f32 %v339, %v2276
          %2278 = vmatprep.subr.mxu0 %v2277
          %v2279 = vand.u32 %v338, 4294901760
          %v2280 = vsub.f32 %v338, %v2279
          %2281 = vmatpush1.msra.mxu0 %v2280
          %v2282 = vand.u32 %v341, 4294901760
          %v2283 = vsub.f32 %v341, %v2282
          %2284 = vmatprep.subr.mxu0 %v2283
          %v2285 = vand.u32 %v340, 4294901760
          %v2286 = vsub.f32 %v340, %v2285
          %2287 = vmatpush1.msra.mxu0 %v2286
          %v2288 = vand.u32 %v343, 4294901760
          %v2289 = vsub.f32 %v343, %v2288
          %2290 = vmatprep.subr.mxu0 %v2289
          %v2291 = vand.u32 %v342, 4294901760
          %v2292 = vsub.f32 %v342, %v2291
          %2293 = vmatpush1.msra.mxu0 %v2292
          %v2294 = vand.u32 %v345, 4294901760
          %v2295 = vsub.f32 %v345, %v2294
          %2296 = vmatprep.subr.mxu0 %v2295
          %v2297 = vand.u32 %v344, 4294901760
          %v2298 = vsub.f32 %v344, %v2297
          %2299 = vmatpush1.msra.mxu0 %v2298
          %v2300 = vand.u32 %v347, 4294901760
          %v2301 = vsub.f32 %v347, %v2300
          %2302 = vmatprep.subr.mxu0 %v2301
          %v2303 = vand.u32 %v346, 4294901760
          %v2304 = vsub.f32 %v346, %v2303
          %2305 = vmatpush1.msra.mxu0 %v2304
          %v2306 = vand.u32 %v349, 4294901760
          %v2307 = vsub.f32 %v349, %v2306
          %2308 = vmatprep.subr.mxu0 %v2307
          %v2309 = vand.u32 %v348, 4294901760
          %v2310 = vsub.f32 %v348, %v2309
          %2311 = vmatpush1.msra.mxu0 %v2310
          %v2312 = vand.u32 %v351, 4294901760
          %v2313 = vsub.f32 %v351, %v2312
          %2314 = vmatprep.subr.mxu0 %v2313
          %v2315 = vand.u32 %v350, 4294901760
          %v2316 = vsub.f32 %v350, %v2315
          %2317 = vmatpush1.msra.mxu0 %v2316
          %v2318 = vand.u32 %v353, 4294901760
          %v2319 = vsub.f32 %v353, %v2318
          %2320 = vmatprep.subr.mxu0 %v2319
          %v2321 = vand.u32 %v352, 4294901760
          %v2322 = vsub.f32 %v352, %v2321
          %2323 = vmatpush1.msra.mxu0 %v2322
          %v2324 = vand.u32 %v355, 4294901760
          %v2325 = vsub.f32 %v355, %v2324
          %2326 = vmatprep.subr.mxu0 %v2325
          %v2327 = vand.u32 %v354, 4294901760
          %v2328 = vsub.f32 %v354, %v2327
          %2329 = vmatpush1.msra.mxu0 %v2328
          %v2330 = vand.u32 %v357, 4294901760
          %v2331 = vsub.f32 %v357, %v2330
          %2332 = vmatprep.subr.mxu0 %v2331
          %v2333 = vand.u32 %v356, 4294901760
          %v2334 = vsub.f32 %v356, %v2333
          %2335 = vmatpush1.msra.mxu0 %v2334
          %v2336 = vand.u32 %v359, 4294901760
          %v2337 = vsub.f32 %v359, %v2336
          %2338 = vmatprep.subr.mxu0 %v2337
          %v2339 = vand.u32 %v358, 4294901760
          %v2340 = vsub.f32 %v358, %v2339
          %2341 = vmatpush1.msra.mxu0 %v2340
          %v2342 = vand.u32 %v361, 4294901760
          %v2343 = vsub.f32 %v361, %v2342
          %2344 = vmatprep.subr.mxu0 %v2343
          %v2345 = vand.u32 %v360, 4294901760
          %v2346 = vsub.f32 %v360, %v2345
          %2347 = vmatpush1.msra.mxu0 %v2346
          %v2348 = vand.u32 %v363, 4294901760
          %v2349 = vsub.f32 %v363, %v2348
          %2350 = vmatprep.subr.mxu0 %v2349
          %v2351 = vand.u32 %v362, 4294901760
          %v2352 = vsub.f32 %v362, %v2351
          %2353 = vmatpush1.msra.mxu0 %v2352
          %v2354 = vand.u32 %v365, 4294901760
          %v2355 = vsub.f32 %v365, %v2354
          %2356 = vmatprep.subr.mxu0 %v2355
          %v2357 = vand.u32 %v364, 4294901760
          %v2358 = vsub.f32 %v364, %v2357
          %2359 = vmatpush1.msra.mxu0 %v2358
          %v2360 = vand.u32 %v367, 4294901760
          %v2361 = vsub.f32 %v367, %v2360
          %2362 = vmatprep.subr.mxu0 %v2361
          %v2363 = vand.u32 %v366, 4294901760
          %v2364 = vsub.f32 %v366, %v2363
          %2365 = vmatpush1.msra.mxu0 %v2364
          %v2366 = vand.u32 %v369, 4294901760
          %v2367 = vsub.f32 %v369, %v2366
          %2368 = vmatprep.subr.mxu0 %v2367
          %v2369 = vand.u32 %v368, 4294901760
          %v2370 = vsub.f32 %v368, %v2369
          %2371 = vmatpush1.msra.mxu0 %v2370
          %v2372 = vand.u32 %v371, 4294901760
          %v2373 = vsub.f32 %v371, %v2372
          %2374 = vmatprep.subr.mxu0 %v2373
          %v2375 = vand.u32 %v370, 4294901760
          %v2376 = vsub.f32 %v370, %v2375
          %2377 = vmatpush1.msra.mxu0 %v2376
          %v2378 = vand.u32 %v373, 4294901760
          %v2379 = vsub.f32 %v373, %v2378
          %2380 = vmatprep.subr.mxu0 %v2379
          %v2381 = vand.u32 %v372, 4294901760
          %v2382 = vsub.f32 %v372, %v2381
          %2383 = vmatpush1.msra.mxu0 %v2382
          %v2384 = vand.u32 %v375, 4294901760
          %v2385 = vsub.f32 %v375, %v2384
          %2386 = vmatprep.subr.mxu0 %v2385
          %v2387 = vand.u32 %v374, 4294901760
          %v2388 = vsub.f32 %v374, %v2387
          %2389 = vmatpush1.msra.mxu0 %v2388
          %v2390 = vand.u32 %v247, 4294901760
          %v2391 = vsub.f32 %v247, %v2390
          %2392 = vmatprep.mubr.f32.mxu0 %v2391
          %v2393 = vand.u32 %v241, 4294901760
          %v2394 = vsub.f32 %v241, %v2393
          %2395 = vmatmul.mubr.f32.gmra.mrb[0].mxu0 %v2394
          %v2396 = vpop.f32.mrb[0].mxu0
          %v2397 = vadd.f32 %v2194, %v2396
          %v2398 = vpop.f32.mrb[0].mxu0
          %v2399 = vadd.f32 %v2196, %v2398
          %2400 = vdwg.mxu0
          %v2401 = vand.u32 %v313, 4294901760
          %2402 = vmatprep.subr.mxu0 %v2401
          %v2403 = vand.u32 %v312, 4294901760
          %2404 = vmatpush1.msra.mxu0 %v2403
          %v2405 = vand.u32 %v315, 4294901760
          %2406 = vmatprep.subr.mxu0 %v2405
          %v2407 = vand.u32 %v314, 4294901760
          %2408 = vmatpush1.msra.mxu0 %v2407
          %v2409 = vand.u32 %v317, 4294901760
          %2410 = vmatprep.subr.mxu0 %v2409
          %v2411 = vand.u32 %v316, 4294901760
          %2412 = vmatpush1.msra.mxu0 %v2411
          %v2413 = vand.u32 %v319, 4294901760
          %2414 = vmatprep.subr.mxu0 %v2413
          %v2415 = vand.u32 %v318, 4294901760
          %2416 = vmatpush1.msra.mxu0 %v2415
          %v2417 = vand.u32 %v321, 4294901760
          %2418 = vmatprep.subr.mxu0 %v2417
          %v2419 = vand.u32 %v320, 4294901760
          %2420 = vmatpush1.msra.mxu0 %v2419
          %v2421 = vand.u32 %v323, 4294901760
          %2422 = vmatprep.subr.mxu0 %v2421
          %v2423 = vand.u32 %v322, 4294901760
          %2424 = vmatpush1.msra.mxu0 %v2423
          %v2425 = vand.u32 %v325, 4294901760
          %2426 = vmatprep.subr.mxu0 %v2425
          %v2427 = vand.u32 %v324, 4294901760
          %2428 = vmatpush1.msra.mxu0 %v2427
          %v2429 = vand.u32 %v327, 4294901760
          %2430 = vmatprep.subr.mxu0 %v2429
          %v2431 = vand.u32 %v326, 4294901760
          %2432 = vmatpush1.msra.mxu0 %v2431
          %v2433 = vand.u32 %v329, 4294901760
          %2434 = vmatprep.subr.mxu0 %v2433
          %v2435 = vand.u32 %v328, 4294901760
          %2436 = vmatpush1.msra.mxu0 %v2435
          %v2437 = vand.u32 %v331, 4294901760
          %2438 = vmatprep.subr.mxu0 %v2437
          %v2439 = vand.u32 %v330, 4294901760
          %2440 = vmatpush1.msra.mxu0 %v2439
          %v2441 = vand.u32 %v333, 4294901760
          %2442 = vmatprep.subr.mxu0 %v2441
          %v2443 = vand.u32 %v332, 4294901760
          %2444 = vmatpush1.msra.mxu0 %v2443
          %v2445 = vand.u32 %v335, 4294901760
          %2446 = vmatprep.subr.mxu0 %v2445
          %v2447 = vand.u32 %v334, 4294901760
          %2448 = vmatpush1.msra.mxu0 %v2447
          %v2449 = vand.u32 %v337, 4294901760
          %2450 = vmatprep.subr.mxu0 %v2449
          %v2451 = vand.u32 %v336, 4294901760
          %2452 = vmatpush1.msra.mxu0 %v2451
          %v2453 = vand.u32 %v339, 4294901760
          %2454 = vmatprep.subr.mxu0 %v2453
          %v2455 = vand.u32 %v338, 4294901760
          %2456 = vmatpush1.msra.mxu0 %v2455
          %v2457 = vand.u32 %v341, 4294901760
          %2458 = vmatprep.subr.mxu0 %v2457
          %v2459 = vand.u32 %v340, 4294901760
          %2460 = vmatpush1.msra.mxu0 %v2459
          %v2461 = vand.u32 %v343, 4294901760
          %2462 = vmatprep.subr.mxu0 %v2461
          %v2463 = vand.u32 %v342, 4294901760
          %2464 = vmatpush1.msra.mxu0 %v2463
          %v2465 = vand.u32 %v345, 4294901760
          %2466 = vmatprep.subr.mxu0 %v2465
          %v2467 = vand.u32 %v344, 4294901760
          %2468 = vmatpush1.msra.mxu0 %v2467
          %v2469 = vand.u32 %v347, 4294901760
          %2470 = vmatprep.subr.mxu0 %v2469
          %v2471 = vand.u32 %v346, 4294901760
          %2472 = vmatpush1.msra.mxu0 %v2471
          %v2473 = vand.u32 %v349, 4294901760
          %2474 = vmatprep.subr.mxu0 %v2473
          %v2475 = vand.u32 %v348, 4294901760
          %2476 = vmatpush1.msra.mxu0 %v2475
          %v2477 = vand.u32 %v351, 4294901760
          %2478 = vmatprep.subr.mxu0 %v2477
          %v2479 = vand.u32 %v350, 4294901760
          %2480 = vmatpush1.msra.mxu0 %v2479
          %v2481 = vand.u32 %v353, 4294901760
          %2482 = vmatprep.subr.mxu0 %v2481
          %v2483 = vand.u32 %v352, 4294901760
          %2484 = vmatpush1.msra.mxu0 %v2483
          %v2485 = vand.u32 %v355, 4294901760
          %2486 = vmatprep.subr.mxu0 %v2485
          %v2487 = vand.u32 %v354, 4294901760
          %2488 = vmatpush1.msra.mxu0 %v2487
          %v2489 = vand.u32 %v357, 4294901760
          %2490 = vmatprep.subr.mxu0 %v2489
          %v2491 = vand.u32 %v356, 4294901760
          %2492 = vmatpush1.msra.mxu0 %v2491
          %v2493 = vand.u32 %v359, 4294901760
          %2494 = vmatprep.subr.mxu0 %v2493
          %v2495 = vand.u32 %v358, 4294901760
          %2496 = vmatpush1.msra.mxu0 %v2495
          %v2497 = vand.u32 %v361, 4294901760
          %2498 = vmatprep.subr.mxu0 %v2497
          %v2499 = vand.u32 %v360, 4294901760
          %2500 = vmatpush1.msra.mxu0 %v2499
          %v2501 = vand.u32 %v363, 4294901760
          %2502 = vmatprep.subr.mxu0 %v2501
          %v2503 = vand.u32 %v362, 4294901760
          %2504 = vmatpush1.msra.mxu0 %v2503
          %v2505 = vand.u32 %v365, 4294901760
          %2506 = vmatprep.subr.mxu0 %v2505
          %v2507 = vand.u32 %v364, 4294901760
          %2508 = vmatpush1.msra.mxu0 %v2507
          %v2509 = vand.u32 %v367, 4294901760
          %2510 = vmatprep.subr.mxu0 %v2509
          %v2511 = vand.u32 %v366, 4294901760
          %2512 = vmatpush1.msra.mxu0 %v2511
          %v2513 = vand.u32 %v369, 4294901760
          %2514 = vmatprep.subr.mxu0 %v2513
          %v2515 = vand.u32 %v368, 4294901760
          %2516 = vmatpush1.msra.mxu0 %v2515
          %v2517 = vand.u32 %v371, 4294901760
          %2518 = vmatprep.subr.mxu0 %v2517
          %v2519 = vand.u32 %v370, 4294901760
          %2520 = vmatpush1.msra.mxu0 %v2519
          %v2521 = vand.u32 %v373, 4294901760
          %2522 = vmatprep.subr.mxu0 %v2521
          %v2523 = vand.u32 %v372, 4294901760
          %2524 = vmatpush1.msra.mxu0 %v2523
          %v2525 = vand.u32 %v375, 4294901760
          %2526 = vmatprep.subr.mxu0 %v2525
          %v2527 = vand.u32 %v374, 4294901760
          %2528 = vmatpush1.msra.mxu0 %v2527
          %v2529 = vand.u32 %v247, 4294901760
          %v2530 = vsub.f32 %v247, %v2529
          %v2531 = vand.u32 %v2530, 4294901760
          %2532 = vmatprep.mubr.f32.mxu0 %v2531
          %v2533 = vand.u32 %v241, 4294901760
          %v2534 = vsub.f32 %v241, %v2533
          %v2535 = vand.u32 %v2534, 4294901760
          %2536 = vmatmul.mubr.f32.gmra.mrb[0].mxu0 %v2535
          %v2537 = vpop.f32.mrb[0].mxu0
          %v2538 = vadd.f32 %v2397, %v2537
          %v2539 = vpop.f32.mrb[0].mxu0
          %v2540 = vadd.f32 %v2399, %v2539
          %2541 = vdwg.mxu0
          %v2542 = vand.u32 %v313, 4294901760
          %v2543 = vsub.f32 %v313, %v2542
          %v2544 = vand.u32 %v2543, 4294901760
          %2545 = vmatprep.subr.mxu0 %v2544
          %v2546 = vand.u32 %v312, 4294901760
          %v2547 = vsub.f32 %v312, %v2546
          %v2548 = vand.u32 %v2547, 4294901760
          %2549 = vmatpush1.msra.mxu0 %v2548
          %v2550 = vand.u32 %v315, 4294901760
          %v2551 = vsub.f32 %v315, %v2550
          %v2552 = vand.u32 %v2551, 4294901760
          %2553 = vmatprep.subr.mxu0 %v2552
          %v2554 = vand.u32 %v314, 4294901760
          %v2555 = vsub.f32 %v314, %v2554
          %v2556 = vand.u32 %v2555, 4294901760
          %2557 = vmatpush1.msra.mxu0 %v2556
          %v2558 = vand.u32 %v317, 4294901760
          %v2559 = vsub.f32 %v317, %v2558
          %v2560 = vand.u32 %v2559, 4294901760
          %2561 = vmatprep.subr.mxu0 %v2560
          %v2562 = vand.u32 %v316, 4294901760
          %v2563 = vsub.f32 %v316, %v2562
          %v2564 = vand.u32 %v2563, 4294901760
          %2565 = vmatpush1.msra.mxu0 %v2564
          %v2566 = vand.u32 %v319, 4294901760
          %v2567 = vsub.f32 %v319, %v2566
          %v2568 = vand.u32 %v2567, 4294901760
          %2569 = vmatprep.subr.mxu0 %v2568
          %v2570 = vand.u32 %v318, 4294901760
          %v2571 = vsub.f32 %v318, %v2570
          %v2572 = vand.u32 %v2571, 4294901760
          %2573 = vmatpush1.msra.mxu0 %v2572
          %v2574 = vand.u32 %v321, 4294901760
          %v2575 = vsub.f32 %v321, %v2574
          %v2576 = vand.u32 %v2575, 4294901760
          %2577 = vmatprep.subr.mxu0 %v2576
          %v2578 = vand.u32 %v320, 4294901760
          %v2579 = vsub.f32 %v320, %v2578
          %v2580 = vand.u32 %v2579, 4294901760
          %2581 = vmatpush1.msra.mxu0 %v2580
          %v2582 = vand.u32 %v323, 4294901760
          %v2583 = vsub.f32 %v323, %v2582
          %v2584 = vand.u32 %v2583, 4294901760
          %2585 = vmatprep.subr.mxu0 %v2584
          %v2586 = vand.u32 %v322, 4294901760
          %v2587 = vsub.f32 %v322, %v2586
          %v2588 = vand.u32 %v2587, 4294901760
          %2589 = vmatpush1.msra.mxu0 %v2588
          %v2590 = vand.u32 %v325, 4294901760
          %v2591 = vsub.f32 %v325, %v2590
          %v2592 = vand.u32 %v2591, 4294901760
          %2593 = vmatprep.subr.mxu0 %v2592
          %v2594 = vand.u32 %v324, 4294901760
          %v2595 = vsub.f32 %v324, %v2594
          %v2596 = vand.u32 %v2595, 4294901760
          %2597 = vmatpush1.msra.mxu0 %v2596
          %v2598 = vand.u32 %v327, 4294901760
          %v2599 = vsub.f32 %v327, %v2598
          %v2600 = vand.u32 %v2599, 4294901760
          %2601 = vmatprep.subr.mxu0 %v2600
          %v2602 = vand.u32 %v326, 4294901760
          %v2603 = vsub.f32 %v326, %v2602
          %v2604 = vand.u32 %v2603, 4294901760
          %2605 = vmatpush1.msra.mxu0 %v2604
          %v2606 = vand.u32 %v329, 4294901760
          %v2607 = vsub.f32 %v329, %v2606
          %v2608 = vand.u32 %v2607, 4294901760
          %2609 = vmatprep.subr.mxu0 %v2608
          %v2610 = vand.u32 %v328, 4294901760
          %v2611 = vsub.f32 %v328, %v2610
          %v2612 = vand.u32 %v2611, 4294901760
          %2613 = vmatpush1.msra.mxu0 %v2612
          %v2614 = vand.u32 %v331, 4294901760
          %v2615 = vsub.f32 %v331, %v2614
          %v2616 = vand.u32 %v2615, 4294901760
          %2617 = vmatprep.subr.mxu0 %v2616
          %v2618 = vand.u32 %v330, 4294901760
          %v2619 = vsub.f32 %v330, %v2618
          %v2620 = vand.u32 %v2619, 4294901760
          %2621 = vmatpush1.msra.mxu0 %v2620
          %v2622 = vand.u32 %v333, 4294901760
          %v2623 = vsub.f32 %v333, %v2622
          %v2624 = vand.u32 %v2623, 4294901760
          %2625 = vmatprep.subr.mxu0 %v2624
          %v2626 = vand.u32 %v332, 4294901760
          %v2627 = vsub.f32 %v332, %v2626
          %v2628 = vand.u32 %v2627, 4294901760
          %2629 = vmatpush1.msra.mxu0 %v2628
          %v2630 = vand.u32 %v335, 4294901760
          %v2631 = vsub.f32 %v335, %v2630
          %v2632 = vand.u32 %v2631, 4294901760
          %2633 = vmatprep.subr.mxu0 %v2632
          %v2634 = vand.u32 %v334, 4294901760
          %v2635 = vsub.f32 %v334, %v2634
          %v2636 = vand.u32 %v2635, 4294901760
          %2637 = vmatpush1.msra.mxu0 %v2636
          %v2638 = vand.u32 %v337, 4294901760
          %v2639 = vsub.f32 %v337, %v2638
          %v2640 = vand.u32 %v2639, 4294901760
          %2641 = vmatprep.subr.mxu0 %v2640
          %v2642 = vand.u32 %v336, 4294901760
          %v2643 = vsub.f32 %v336, %v2642
          %v2644 = vand.u32 %v2643, 4294901760
          %2645 = vmatpush1.msra.mxu0 %v2644
          %v2646 = vand.u32 %v339, 4294901760
          %v2647 = vsub.f32 %v339, %v2646
          %v2648 = vand.u32 %v2647, 4294901760
          %2649 = vmatprep.subr.mxu0 %v2648
          %v2650 = vand.u32 %v338, 4294901760
          %v2651 = vsub.f32 %v338, %v2650
          %v2652 = vand.u32 %v2651, 4294901760
          %2653 = vmatpush1.msra.mxu0 %v2652
          %v2654 = vand.u32 %v341, 4294901760
          %v2655 = vsub.f32 %v341, %v2654
          %v2656 = vand.u32 %v2655, 4294901760
          %2657 = vmatprep.subr.mxu0 %v2656
          %v2658 = vand.u32 %v340, 4294901760
          %v2659 = vsub.f32 %v340, %v2658
          %v2660 = vand.u32 %v2659, 4294901760
          %2661 = vmatpush1.msra.mxu0 %v2660
          %v2662 = vand.u32 %v343, 4294901760
          %v2663 = vsub.f32 %v343, %v2662
          %v2664 = vand.u32 %v2663, 4294901760
          %2665 = vmatprep.subr.mxu0 %v2664
          %v2666 = vand.u32 %v342, 4294901760
          %v2667 = vsub.f32 %v342, %v2666
          %v2668 = vand.u32 %v2667, 4294901760
          %2669 = vmatpush1.msra.mxu0 %v2668
          %v2670 = vand.u32 %v345, 4294901760
          %v2671 = vsub.f32 %v345, %v2670
          %v2672 = vand.u32 %v2671, 4294901760
          %2673 = vmatprep.subr.mxu0 %v2672
          %v2674 = vand.u32 %v344, 4294901760
          %v2675 = vsub.f32 %v344, %v2674
          %v2676 = vand.u32 %v2675, 4294901760
          %2677 = vmatpush1.msra.mxu0 %v2676
          %v2678 = vand.u32 %v347, 4294901760
          %v2679 = vsub.f32 %v347, %v2678
          %v2680 = vand.u32 %v2679, 4294901760
          %2681 = vmatprep.subr.mxu0 %v2680
          %v2682 = vand.u32 %v346, 4294901760
          %v2683 = vsub.f32 %v346, %v2682
          %v2684 = vand.u32 %v2683, 4294901760
          %2685 = vmatpush1.msra.mxu0 %v2684
          %v2686 = vand.u32 %v349, 4294901760
          %v2687 = vsub.f32 %v349, %v2686
          %v2688 = vand.u32 %v2687, 4294901760
          %2689 = vmatprep.subr.mxu0 %v2688
          %v2690 = vand.u32 %v348, 4294901760
          %v2691 = vsub.f32 %v348, %v2690
          %v2692 = vand.u32 %v2691, 4294901760
          %2693 = vmatpush1.msra.mxu0 %v2692
          %v2694 = vand.u32 %v351, 4294901760
          %v2695 = vsub.f32 %v351, %v2694
          %v2696 = vand.u32 %v2695, 4294901760
          %2697 = vmatprep.subr.mxu0 %v2696
          %v2698 = vand.u32 %v350, 4294901760
          %v2699 = vsub.f32 %v350, %v2698
          %v2700 = vand.u32 %v2699, 4294901760
          %2701 = vmatpush1.msra.mxu0 %v2700
          %v2702 = vand.u32 %v353, 4294901760
          %v2703 = vsub.f32 %v353, %v2702
          %v2704 = vand.u32 %v2703, 4294901760
          %2705 = vmatprep.subr.mxu0 %v2704
          %v2706 = vand.u32 %v352, 4294901760
          %v2707 = vsub.f32 %v352, %v2706
          %v2708 = vand.u32 %v2707, 4294901760
          %2709 = vmatpush1.msra.mxu0 %v2708
          %v2710 = vand.u32 %v355, 4294901760
          %v2711 = vsub.f32 %v355, %v2710
          %v2712 = vand.u32 %v2711, 4294901760
          %2713 = vmatprep.subr.mxu0 %v2712
          %v2714 = vand.u32 %v354, 4294901760
          %v2715 = vsub.f32 %v354, %v2714
          %v2716 = vand.u32 %v2715, 4294901760
          %2717 = vmatpush1.msra.mxu0 %v2716
          %v2718 = vand.u32 %v357, 4294901760
          %v2719 = vsub.f32 %v357, %v2718
          %v2720 = vand.u32 %v2719, 4294901760
          %2721 = vmatprep.subr.mxu0 %v2720
          %v2722 = vand.u32 %v356, 4294901760
          %v2723 = vsub.f32 %v356, %v2722
          %v2724 = vand.u32 %v2723, 4294901760
          %2725 = vmatpush1.msra.mxu0 %v2724
          %v2726 = vand.u32 %v359, 4294901760
          %v2727 = vsub.f32 %v359, %v2726
          %v2728 = vand.u32 %v2727, 4294901760
          %2729 = vmatprep.subr.mxu0 %v2728
          %v2730 = vand.u32 %v358, 4294901760
          %v2731 = vsub.f32 %v358, %v2730
          %v2732 = vand.u32 %v2731, 4294901760
          %2733 = vmatpush1.msra.mxu0 %v2732
          %v2734 = vand.u32 %v361, 4294901760
          %v2735 = vsub.f32 %v361, %v2734
          %v2736 = vand.u32 %v2735, 4294901760
          %2737 = vmatprep.subr.mxu0 %v2736
          %v2738 = vand.u32 %v360, 4294901760
          %v2739 = vsub.f32 %v360, %v2738
          %v2740 = vand.u32 %v2739, 4294901760
          %2741 = vmatpush1.msra.mxu0 %v2740
          %v2742 = vand.u32 %v363, 4294901760
          %v2743 = vsub.f32 %v363, %v2742
          %v2744 = vand.u32 %v2743, 4294901760
          %2745 = vmatprep.subr.mxu0 %v2744
          %v2746 = vand.u32 %v362, 4294901760
          %v2747 = vsub.f32 %v362, %v2746
          %v2748 = vand.u32 %v2747, 4294901760
          %2749 = vmatpush1.msra.mxu0 %v2748
          %v2750 = vand.u32 %v365, 4294901760
          %v2751 = vsub.f32 %v365, %v2750
          %v2752 = vand.u32 %v2751, 4294901760
          %2753 = vmatprep.subr.mxu0 %v2752
          %v2754 = vand.u32 %v364, 4294901760
          %v2755 = vsub.f32 %v364, %v2754
          %v2756 = vand.u32 %v2755, 4294901760
          %2757 = vmatpush1.msra.mxu0 %v2756
          %v2758 = vand.u32 %v367, 4294901760
          %v2759 = vsub.f32 %v367, %v2758
          %v2760 = vand.u32 %v2759, 4294901760
          %2761 = vmatprep.subr.mxu0 %v2760
          %v2762 = vand.u32 %v366, 4294901760
          %v2763 = vsub.f32 %v366, %v2762
          %v2764 = vand.u32 %v2763, 4294901760
          %2765 = vmatpush1.msra.mxu0 %v2764
          %v2766 = vand.u32 %v369, 4294901760
          %v2767 = vsub.f32 %v369, %v2766
          %v2768 = vand.u32 %v2767, 4294901760
          %2769 = vmatprep.subr.mxu0 %v2768
          %v2770 = vand.u32 %v368, 4294901760
          %v2771 = vsub.f32 %v368, %v2770
          %v2772 = vand.u32 %v2771, 4294901760
          %2773 = vmatpush1.msra.mxu0 %v2772
          %v2774 = vand.u32 %v371, 4294901760
          %v2775 = vsub.f32 %v371, %v2774
          %v2776 = vand.u32 %v2775, 4294901760
          %2777 = vmatprep.subr.mxu0 %v2776
          %v2778 = vand.u32 %v370, 4294901760
          %v2779 = vsub.f32 %v370, %v2778
          %v2780 = vand.u32 %v2779, 4294901760
          %2781 = vmatpush1.msra.mxu0 %v2780
          %v2782 = vand.u32 %v373, 4294901760
          %v2783 = vsub.f32 %v373, %v2782
          %v2784 = vand.u32 %v2783, 4294901760
          %2785 = vmatprep.subr.mxu0 %v2784
          %v2786 = vand.u32 %v372, 4294901760
          %v2787 = vsub.f32 %v372, %v2786
          %v2788 = vand.u32 %v2787, 4294901760
          %2789 = vmatpush1.msra.mxu0 %v2788
          %v2790 = vand.u32 %v375, 4294901760
          %v2791 = vsub.f32 %v375, %v2790
          %v2792 = vand.u32 %v2791, 4294901760
          %2793 = vmatprep.subr.mxu0 %v2792
          %v2794 = vand.u32 %v374, 4294901760
          %v2795 = vsub.f32 %v374, %v2794
          %v2796 = vand.u32 %v2795, 4294901760
          %2797 = vmatpush1.msra.mxu0 %v2796
          %v2798 = vand.u32 %v247, 4294901760
          %2799 = vmatprep.mubr.f32.mxu0 %v2798
          %v2800 = vand.u32 %v241, 4294901760
          %2801 = vmatmul.mubr.f32.gmra.mrb[0].mxu0 %v2800
          %v2802 = vpop.f32.mrb[0].mxu0
          %v2803 = vadd.f32 %v2538, %v2802
          %v2804 = vpop.f32.mrb[0].mxu0
          %v2805 = vadd.f32 %v2540, %v2804
          %2806 = vdwg.mxu0
          %v2807 = vand.u32 %v313, 4294901760
          %2808 = vmatprep.subr.mxu0 %v2807
          %v2809 = vand.u32 %v312, 4294901760
          %2810 = vmatpush1.msra.mxu0 %v2809
          %v2811 = vand.u32 %v315, 4294901760
          %2812 = vmatprep.subr.mxu0 %v2811
          %v2813 = vand.u32 %v314, 4294901760
          %2814 = vmatpush1.msra.mxu0 %v2813
          %v2815 = vand.u32 %v317, 4294901760
          %2816 = vmatprep.subr.mxu0 %v2815
          %v2817 = vand.u32 %v316, 4294901760
          %2818 = vmatpush1.msra.mxu0 %v2817
          %v2819 = vand.u32 %v319, 4294901760
          %2820 = vmatprep.subr.mxu0 %v2819
          %v2821 = vand.u32 %v318, 4294901760
          %2822 = vmatpush1.msra.mxu0 %v2821
          %v2823 = vand.u32 %v321, 4294901760
          %2824 = vmatprep.subr.mxu0 %v2823
          %v2825 = vand.u32 %v320, 4294901760
          %2826 = vmatpush1.msra.mxu0 %v2825
          %v2827 = vand.u32 %v323, 4294901760
          %2828 = vmatprep.subr.mxu0 %v2827
          %v2829 = vand.u32 %v322, 4294901760
          %2830 = vmatpush1.msra.mxu0 %v2829
          %v2831 = vand.u32 %v325, 4294901760
          %2832 = vmatprep.subr.mxu0 %v2831
          %v2833 = vand.u32 %v324, 4294901760
          %2834 = vmatpush1.msra.mxu0 %v2833
          %v2835 = vand.u32 %v327, 4294901760
          %2836 = vmatprep.subr.mxu0 %v2835
          %v2837 = vand.u32 %v326, 4294901760
          %2838 = vmatpush1.msra.mxu0 %v2837
          %v2839 = vand.u32 %v329, 4294901760
          %2840 = vmatprep.subr.mxu0 %v2839
          %v2841 = vand.u32 %v328, 4294901760
          %2842 = vmatpush1.msra.mxu0 %v2841
          %v2843 = vand.u32 %v331, 4294901760
          %2844 = vmatprep.subr.mxu0 %v2843
          %v2845 = vand.u32 %v330, 4294901760
          %2846 = vmatpush1.msra.mxu0 %v2845
          %v2847 = vand.u32 %v333, 4294901760
          %2848 = vmatprep.subr.mxu0 %v2847
          %v2849 = vand.u32 %v332, 4294901760
          %2850 = vmatpush1.msra.mxu0 %v2849
          %v2851 = vand.u32 %v335, 4294901760
          %2852 = vmatprep.subr.mxu0 %v2851
          %v2853 = vand.u32 %v334, 4294901760
          %2854 = vmatpush1.msra.mxu0 %v2853
          %v2855 = vand.u32 %v337, 4294901760
          %2856 = vmatprep.subr.mxu0 %v2855
          %v2857 = vand.u32 %v336, 4294901760
          %2858 = vmatpush1.msra.mxu0 %v2857
          %v2859 = vand.u32 %v339, 4294901760
          %2860 = vmatprep.subr.mxu0 %v2859
          %v2861 = vand.u32 %v338, 4294901760
          %2862 = vmatpush1.msra.mxu0 %v2861
          %v2863 = vand.u32 %v341, 4294901760
          %2864 = vmatprep.subr.mxu0 %v2863
          %v2865 = vand.u32 %v340, 4294901760
          %2866 = vmatpush1.msra.mxu0 %v2865
          %v2867 = vand.u32 %v343, 4294901760
          %2868 = vmatprep.subr.mxu0 %v2867
          %v2869 = vand.u32 %v342, 4294901760
          %2870 = vmatpush1.msra.mxu0 %v2869
          %v2871 = vand.u32 %v345, 4294901760
          %2872 = vmatprep.subr.mxu0 %v2871
          %v2873 = vand.u32 %v344, 4294901760
          %2874 = vmatpush1.msra.mxu0 %v2873
          %v2875 = vand.u32 %v347, 4294901760
          %2876 = vmatprep.subr.mxu0 %v2875
          %v2877 = vand.u32 %v346, 4294901760
          %2878 = vmatpush1.msra.mxu0 %v2877
          %v2879 = vand.u32 %v349, 4294901760
          %2880 = vmatprep.subr.mxu0 %v2879
          %v2881 = vand.u32 %v348, 4294901760
          %2882 = vmatpush1.msra.mxu0 %v2881
          %v2883 = vand.u32 %v351, 4294901760
          %2884 = vmatprep.subr.mxu0 %v2883
          %v2885 = vand.u32 %v350, 4294901760
          %2886 = vmatpush1.msra.mxu0 %v2885
          %v2887 = vand.u32 %v353, 4294901760
          %2888 = vmatprep.subr.mxu0 %v2887
          %v2889 = vand.u32 %v352, 4294901760
          %2890 = vmatpush1.msra.mxu0 %v2889
          %v2891 = vand.u32 %v355, 4294901760
          %2892 = vmatprep.subr.mxu0 %v2891
          %v2893 = vand.u32 %v354, 4294901760
          %2894 = vmatpush1.msra.mxu0 %v2893
          %v2895 = vand.u32 %v357, 4294901760
          %2896 = vmatprep.subr.mxu0 %v2895
          %v2897 = vand.u32 %v356, 4294901760
          %2898 = vmatpush1.msra.mxu0 %v2897
          %v2899 = vand.u32 %v359, 4294901760
          %2900 = vmatprep.subr.mxu0 %v2899
          %v2901 = vand.u32 %v358, 4294901760
          %2902 = vmatpush1.msra.mxu0 %v2901
          %v2903 = vand.u32 %v361, 4294901760
          %2904 = vmatprep.subr.mxu0 %v2903
          %v2905 = vand.u32 %v360, 4294901760
          %2906 = vmatpush1.msra.mxu0 %v2905
          %v2907 = vand.u32 %v363, 4294901760
          %2908 = vmatprep.subr.mxu0 %v2907
          %v2909 = vand.u32 %v362, 4294901760
          %2910 = vmatpush1.msra.mxu0 %v2909
          %v2911 = vand.u32 %v365, 4294901760
          %2912 = vmatprep.subr.mxu0 %v2911
          %v2913 = vand.u32 %v364, 4294901760
          %2914 = vmatpush1.msra.mxu0 %v2913
          %v2915 = vand.u32 %v367, 4294901760
          %2916 = vmatprep.subr.mxu0 %v2915
          %v2917 = vand.u32 %v366, 4294901760
          %2918 = vmatpush1.msra.mxu0 %v2917
          %v2919 = vand.u32 %v369, 4294901760
          %2920 = vmatprep.subr.mxu0 %v2919
          %v2921 = vand.u32 %v368, 4294901760
          %2922 = vmatpush1.msra.mxu0 %v2921
          %v2923 = vand.u32 %v371, 4294901760
          %2924 = vmatprep.subr.mxu0 %v2923
          %v2925 = vand.u32 %v370, 4294901760
          %2926 = vmatpush1.msra.mxu0 %v2925
          %v2927 = vand.u32 %v373, 4294901760
          %2928 = vmatprep.subr.mxu0 %v2927
          %v2929 = vand.u32 %v372, 4294901760
          %2930 = vmatpush1.msra.mxu0 %v2929
          %v2931 = vand.u32 %v375, 4294901760
          %2932 = vmatprep.subr.mxu0 %v2931
          %v2933 = vand.u32 %v374, 4294901760
          %2934 = vmatpush1.msra.mxu0 %v2933
          %v2935 = vand.u32 %v247, 4294901760
          %2936 = vmatprep.mubr.f32.mxu0 %v2935
          %v2937 = vand.u32 %v241, 4294901760
          %2938 = vmatmul.mubr.f32.gmra.mrb[0].mxu0 %v2937
          %v2939 = vpop.f32.mrb[0].mxu0
          %v2940 = vadd.f32 %v2803, %v2939
          %v2941 = vpop.f32.mrb[0].mxu0
          %v2942 = vadd.f32 %v2805, %v2941
          %2943 = vdwg.mxu0
          %v2944 = vxor.u32 %v2940, 2147483648
          %v2945 = vxor.u32 %v2942, 2147483648
          %v2946 = vmul.f32 %v2944, 1.442695
          %v2947 = vpow.pop %v2946
          %v2948 = vmul.f32 %v2945, 1.442695
          %v2949 = vpow.pop %v2948
          %v2950 = vadd.f32 %v2947, 1.0
          %v2951 = vadd.f32 %v2949, 1.0
          %v2952 = vrcp.pop %v2950
          %v2953 = vmul.f32 1.0, %v2952
          %v2954 = vrcp.pop %v2951
          %v2955 = vmul.f32 1.0, %v2954
          %v2958 = vcombine.low %v2953, %v2955
          %v2960 = vunpack.c.l.s4 1966171168
          %v2961 = vunpack.c.0.s8 %v2960
          %v2962 = vlaneseq
          %v2963 = vshrl.u32 %v2962, 7
          %v2964 = vsub.s32 %v2961, %v2963
          %v2965 = vrot.slane %v2958, %v2964
          %v2967 = vunpack.c.l.s4 1966171168
          %v2968 = vunpack.c.0.s8 %v2967
          %v2969 = vlaneseq
          %v2970 = vshrl.u32 %v2969, 7
          %v2971 = vsub.s32 %v2968, %v2970
          %v2972 = vrot.slane %v2965, %v2971
          %v2974 = vlaneseq
          %vm2975 = vcmp.ge.s32.totalorder %v2974, 0
          %vm2976 = vcmp.lt.s32.totalorder %v2974, 256
          %vm2977 = vmand %vm2975, %vm2976
          %2978 = vst.msk [vmem:[%s190] sm:$0x3] %vm2977, %v2972
        $region44: #{tpu_custom_call.1} parent=27 // pred_fallthru
          _
        %s2979 = sand.u32 %s89, 1
        %s2980 = scalar_lea.sflag [#allocation6], %s2979
        %s2981 = sand.u32 %s89, 1
        %s2982 = smul.addr %s2981, 2
        %s2983 = scalar_lea.vmem [#allocation9], %s2982
        // Predicated region
        $region45: #{tpu_custom_call.1} parent=27 // pred_check
          %p2984 = pneg %p99
        $region46: #{tpu_custom_call.1} parent=27 // pred_check_branch
          %2986 = sbr.rel (%p2984) target = $region48
        $region47: #{tpu_custom_call.1} parent=27 // pred_region
          %s2988 = ssub.s32 32, 32
          %2989 = vsyncadd %s2980, %s2988
          %s2990 = smul.addr %s24, 2
          %s2991 = smul.addr %s2990, 16
          %s2992 = scalar_lea.hbm %s2, %s2991
          %s2994 = sshll.u32 %s2983, 4
          %s2995 = int_to_ptr.vmem [resolvable:$true] %s2994
          %2997 = dma.vmem_to_hbm [thread:$0]  %s2995, 32, %s2992, %s2980
        $region48: #{tpu_custom_call.1} parent=27 // pred_fallthru
          _
      $region28: #{tpu_custom_call.1} parent=5 // pred_fallthru
        _
      %p2998 = scmp.le.s32.totalorder 2, %s15
      // Predicated region
      $region49: #{tpu_custom_call.1} parent=5 // pred_check
        %p2999 = pneg %p2998
      $region50: #{tpu_custom_call.1} parent=5 // pred_check_branch
        %3001 = sbr.rel (%p2999) target = $region52
      $region51: #{tpu_custom_call.1} parent=5 // pred_region
        %s3002 = ssub.s32 %s15, 2
        // Predicated region
        $region53: #{tpu_custom_call.1} parent=51 // pred_check
          %p3003 = pneg %p105
        $region54: #{tpu_custom_call.1} parent=51 // pred_check_branch
          %3005 = sbr.rel (%p3003) target = $region56
        $region55: #{tpu_custom_call.1} parent=51 // pred_region
          %s3006 = sand.u32 %s90, 1
          %s3007 = scalar_lea.sflag [#allocation6], %s3006
          %s3008 = sand.u32 %s90, 1
          %s3009 = smul.addr %s3008, 2
          %s3010 = scalar_lea.vmem [#allocation9], %s3009
          %3011 = dma.done %s3007, 32
        $region56: #{tpu_custom_call.1} parent=51 // pred_fallthru
          _
      $region52: #{tpu_custom_call.1} parent=5 // pred_fallthru
        _
    $region6: #{tpu_custom_call.1} parent=1 // loop_footer
      %s19 = sadd.s32 1, %s15
    $region7: #{tpu_custom_call.1} parent=1 // loop_footer_branch
      %14 = sbr.rel target = $region3
    $region8: #{tpu_custom_call.1} parent=1 // loop_exit
      _
    %3012 = vsyncpa [#allocation5], 1
    %s3013 = scalar_lea.sflag [#allocation5], 1
    %3014 = vsyncpa %s3013, 1
    %3015 = vsyncpa [#allocation8], 1
    %3016 = vsyncpa [#allocation6], 1
    %s3017 = scalar_lea.sflag [#allocation6], 1
    %3018 = vsyncpa %s3017, 1

</llo_original>
